<compile_context>
chip_gen: v7x
topology: tpu7x:2x2x1
jax: 0.10.0
libtpu: 0.0.40
codegen_flags: <defaults>
</compile_context>

<pallas_src>
import functools

import jax
import jax.numpy as jnp
from jax.experimental import pallas as pl
from jax.experimental.pallas import tpu as pltpu

BETA = 2.0 / 3.0
EPSILON = 1e-6
GAMMA = -0.1
ZETA = 1.1


def _round_up(x, m):
    return (x + m - 1) // m * m


# ----------------------------------------------------------------------------
# Pallas kernel: full ICNN forward for one batch tile (weights resident in VMEM)
# ----------------------------------------------------------------------------
def _icnn_kernel(num_layers, hp,
                 logb_ref, invb_ref,            # SMEM [L+1] each
                 x_ref,                         # [TB, inp]
                 wbot_ref, gbot_ref,            # [inp, (L+1)*Hp + Op]
                 w2t_ref, g2t_ref,              # [L, Hp, Hp]
                 w3t_ref, g3t_ref,              # [Hp, Op]
                 o_ref):                        # [TB, Op]
    wdtype = wbot_ref.dtype
    x = x_ref[...]                              # already in compute dtype

    def gate(w_raw, g):
        # L0 gate fused on the VPU (free filler next to MXU work). `g` is the
        # pre-sigmoid logit: qz (mean path) or (logit(u)+qz)/BETA (sample path).
        sig = 1.0 / (1.0 + jnp.exp(-g))                       # f32 EUP/VPU
        m = jnp.clip(sig * (ZETA - GAMMA) + GAMMA, 0.0, 1.0)
        return (w_raw.astype(jnp.float32) * m).astype(wdtype)

    def sc_softplus(pre, idx, scaled):
        # (1/b) * log(1 + b*exp(z)) == inv_b * softplus(z + log b), stable form.
        z = pre + logb_ref[idx]
        sp = jnp.maximum(z, 0.0) + jnp.log(1.0 + jnp.exp(-jnp.abs(z)))
        return invb_ref[idx] * sp if scaled else sp

    # --- one matmul for every x_in-sided contribution (fc1 | skip_i | fc3_bot)
    w_bot = gate(wbot_ref[...], gbot_ref[...])
    bot = jnp.dot(x, w_bot, preferred_element_type=jnp.float32)

    # fc1 + scSoftPlus_Sec (no 1/beta factor, matches the reference)
    h = sc_softplus(bot[:, :hp], 0, scaled=False)

    # fc2 stack: pre = h @ W2_top[i] + x_in @ W2_bot[i] (latter pre-computed)
    for i in range(num_layers):
        w2 = gate(w2t_ref[i], g2t_ref[i])
        pre = (jnp.dot(h.astype(wdtype), w2, preferred_element_type=jnp.float32)
               + bot[:, (i + 1) * hp:(i + 2) * hp])
        h = sc_softplus(pre, i + 1, scaled=True)

    # fc3
    w3 = gate(w3t_ref[...], g3t_ref[...])
    out = (jnp.dot(h.astype(wdtype), w3, preferred_element_type=jnp.float32)
           + bot[:, (num_layers + 1) * hp:])
    o_ref[...] = out.astype(o_ref.dtype)


# ----------------------------------------------------------------------------
# L0 gate-logit helpers (shared by wrapper and reference so randoms match)
# ----------------------------------------------------------------------------
def _noise_logits(shape, key):
    u = jax.random.uniform(key, shape, jnp.float32,
                           minval=EPSILON, maxval=1.0 - EPSILON)
    return jnp.log(u) - jnp.log(1.0 - u)


def _gate_logits(qz_log_alpha, sample, key):
    if sample:
        return (_noise_logits(qz_log_alpha.shape, key) + qz_log_alpha) / BETA
    return qz_log_alpha


def _mask_from_logits(g):
    return jnp.clip(jax.nn.sigmoid(g) * (ZETA - GAMMA) + GAMMA, 0.0, 1.0)


# ----------------------------------------------------------------------------
# Layout packing: split concat weights into top (acts on h) / bottom (acts on
# x_in), pad hidden/out to lane-dense multiples of 128, concat all bottoms.
# ----------------------------------------------------------------------------
def _pack_stack(a1, a2, a3, hidden, hp, op, dtype):
    # a1: [inp, H]   a2: [L, H+inp, H]   a3: [H+inp, out]
    num_layers = a2.shape[0]
    inp = a1.shape[0]
    dh = hp - hidden
    do = op - a3.shape[1]

    p1 = jnp.pad(a1, ((0, 0), (0, dh)))                                  # [inp, Hp]
    a2_top = jnp.pad(a2[:, :hidden, :], ((0, 0), (0, dh), (0, dh)))      # [L, Hp, Hp]
    a2_bot = jnp.pad(a2[:, hidden:, :], ((0, 0), (0, 0), (0, dh)))       # [L, inp, Hp]
    a3_top = jnp.pad(a3[:hidden, :], ((0, dh), (0, do)))                 # [Hp, Op]
    a3_bot = jnp.pad(a3[hidden:, :], ((0, 0), (0, do)))                  # [inp, Op]

    bot = jnp.concatenate(
        [p1, a2_bot.transpose(1, 0, 2).reshape(inp, num_layers * hp), a3_bot],
        axis=1)                                                          # [inp, (L+1)Hp+Op]
    return bot.astype(dtype), a2_top.astype(dtype), a3_top.astype(dtype)


# ----------------------------------------------------------------------------
# Parameter initialization (mirrors l0_ICNN.__init__ shapes, deterministic)
# ----------------------------------------------------------------------------
def init_l0_icnn_params(key, inp, out, hidden, num_layers, enforce_conv=True):
    val_init = 0.1
    keys = jax.random.split(key, 10)

    w1 = jax.random.truncated_normal(keys[0], -val_init, val_init,
                                     (inp, hidden), jnp.float32)
    qz1 = 0.01 * jax.random.normal(keys[1], (inp, hidden), jnp.float32)
    beta1 = jax.random.uniform(keys[2], (1,), jnp.float32, minval=0.1, maxval=0.3)

    lo2 = 0.0 if enforce_conv else -val_init
    w2 = jax.random.truncated_normal(keys[3], lo2, val_init,
                                     (num_layers, hidden + inp, hidden), jnp.float32)
    qz2 = 0.01 * jax.random.normal(keys[4], (num_layers, hidden + inp, hidden),
                                   jnp.float32)
    betas2 = jax.random.uniform(keys[5], (num_layers,), jnp.float32,
                                minval=0.01, maxval=0.1)

    lo3 = 0.0 if enforce_conv else -val_init
    w3 = jax.random.truncated_normal(keys[6], lo3, val_init,
                                     (hidden + inp, out), jnp.float32)
    qz3 = 0.01 * jax.random.normal(keys[7], (hidden + inp, out), jnp.float32)

    return dict(w1=w1, qz1=qz1, beta1=beta1,
                w2=w2, qz2=qz2, betas2=betas2,
                w3=w3, qz3=qz3)


# ----------------------------------------------------------------------------
# Wrapper: pack layouts, build gate logits, call the Pallas kernel
# ----------------------------------------------------------------------------
def l0_icnn_forward(params, x_in, sample=True, key=None,
                    weight_dtype=jnp.bfloat16, block_b=256):
    batch, inp = x_in.shape
    hidden = params["w1"].shape[1]
    num_layers = params["w2"].shape[0]
    out = params["w3"].shape[1]

    hp = _round_up(hidden, 128)          # lane-dense hidden
    op = _round_up(out, 128)             # lane-dense output

    # ----- gate logits (noise sampled at original shapes, same keys as ref) ---
    if sample and key is None:
        key = jax.random.PRNGKey(1)
    if sample:
        k1, k2, k3 = jax.random.split(key, 3)
    else:
        k1 = k2 = k3 = None
    g1 = _gate_logits(params["qz1"], sample, k1)
    g2 = _gate_logits(params["qz2"], sample, k2)
    g3 = _gate_logits(params["qz3"], sample, k3)

    # ----- pack raw weights (bf16/f32) and gate logits (f32) ------------------
    w_bot, w2_top, w3_top = _pack_stack(params["w1"], params["w2"], params["w3"],
                                        hidden, hp, op, weight_dtype)
    g_bot, g2_top, g3_top = _pack_stack(g1, g2, g3, hidden, hp, op, jnp.float32)

    # ----- host-precomputed activation scalars (SMEM) -------------------------
    log_b = jnp.log(jnp.concatenate([params["beta1"], params["betas2"]])
                    ).astype(jnp.float32)                                  # [L+1]
    inv_b = jnp.concatenate([jnp.ones((1,), jnp.float32),
                             1.0 / params["betas2"]]).astype(jnp.float32)  # [L+1]

    # ----- batch tiling --------------------------------------------------------
    tb = min(block_b, _round_up(batch, 8))
    bp = _round_up(batch, tb)
    x_pad = jnp.pad(x_in.astype(weight_dtype), ((0, bp - batch), (0, 0)))

    bot_cols = (num_layers + 1) * hp + op
    kernel = functools.partial(_icnn_kernel, num_layers, hp)

    y_pad = pl.pallas_call(
        kernel,
        grid=(bp // tb,),
        out_shape=jax.ShapeDtypeStruct((bp, op), jnp.float32),
        in_specs=[
            pl.BlockSpec(memory_space=pltpu.MemorySpace.SMEM),            # log_b
            pl.BlockSpec(memory_space=pltpu.MemorySpace.SMEM),            # inv_b
            pl.BlockSpec((tb, inp), lambda i: (i, 0)),                    # x tile
            pl.BlockSpec((inp, bot_cols), lambda i: (0, 0)),              # w_bot
            pl.BlockSpec((inp, bot_cols), lambda i: (0, 0)),              # g_bot
            pl.BlockSpec((num_layers, hp, hp), lambda i: (0, 0, 0)),      # w2_top
            pl.BlockSpec((num_layers, hp, hp), lambda i: (0, 0, 0)),      # g2_top
            pl.BlockSpec((hp, op), lambda i: (0, 0)),                     # w3_top
            pl.BlockSpec((hp, op), lambda i: (0, 0)),                     # g3_top
        ],
        out_specs=pl.BlockSpec((tb, op), lambda i: (i, 0)),
        compiler_params=pltpu.CompilerParams(
            dimension_semantics=("parallel",)),
    )(log_b, inv_b, x_pad, w_bot, g_bot, w2_top, g2_top, w3_top, g3_top)

    return y_pad[:batch, :out]


# ----------------------------------------------------------------------------
# Pure-JAX reference (mirrors the torch forward) for self-validation
# ----------------------------------------------------------------------------
def l0_icnn_forward_ref(params, x_in, sample=True, key=None):
    num_layers = params["w2"].shape[0]
    if sample and key is None:
        key = jax.random.PRNGKey(1)
    if sample:
        k1, k2, k3 = jax.random.split(key, 3)
    else:
        k1 = k2 = k3 = None
    w1 = params["w1"] * _mask_from_logits(_gate_logits(params["qz1"], sample, k1))
    w2 = params["w2"] * _mask_from_logits(_gate_logits(params["qz2"], sample, k2))
    w3 = params["w3"] * _mask_from_logits(_gate_logits(params["qz3"], sample, k3))

    hi = jax.lax.Precision.HIGHEST
    x = jnp.matmul(x_in, w1, precision=hi)
    b1 = params["beta1"][0]
    x = jnp.log(1.0 + b1 * jnp.exp(x))                         # scSoftPlus_Sec
    for i in range(num_layers):
        xcat = jnp.concatenate([x, x_in], axis=1)
        x = jnp.matmul(xcat, w2[i], precision=hi)
        bi = params["betas2"][i]
        x = (1.0 / bi) * jnp.log(1.0 + bi * jnp.exp(x))        # scSoftPlus
    xcat = jnp.concatenate([x, x_in], axis=1)
    return jnp.matmul(xcat, w3, precision=hi)


# ----------------------------------------------------------------------------
if __name__ == "__main__":
    INP, OUT = 2, 1          # (I1, I2) invariants -> scalar potential
    HIDDEN = 32
    NUM_LAYERS = 2
    BATCH = 8

    root = jax.random.PRNGKey(0)
    k_params, k_x, k_mask = jax.random.split(root, 3)

    params = init_l0_icnn_params(k_params, INP, OUT, HIDDEN, NUM_LAYERS,
                                 enforce_conv=True)
    x_in = 3.0 + 0.1 * jax.random.normal(k_x, (BATCH, INP), jnp.float32)

    y_ref = jax.block_until_ready(
        l0_icnn_forward_ref(params, x_in, sample=True, key=k_mask))

    # f32-weight path (tight check)
    y_f32 = jax.block_until_ready(
        l0_icnn_forward(params, x_in, sample=True, key=k_mask,
                        weight_dtype=jnp.float32))
    assert y_f32.shape == (BATCH, OUT)
    assert jnp.allclose(y_f32, y_ref, atol=1e-3, rtol=1e-3), (y_f32, y_ref)

    # bf16-weight path (f32 accumulation; looser tolerance)
    y_bf16 = jax.block_until_ready(
        l0_icnn_forward(params, x_in, sample=True, key=k_mask,
                        weight_dtype=jnp.bfloat16))
    assert jnp.allclose(y_bf16, y_ref, atol=5e-2, rtol=5e-2), (y_bf16, y_ref)

    # deterministic (sample=False) eval path
    y_det = jax.block_until_ready(
        l0_icnn_forward(params, x_in, sample=False, weight_dtype=jnp.float32))
    y_det_ref = l0_icnn_forward_ref(params, x_in, sample=False)
    assert jnp.allclose(y_det, y_det_ref, atol=1e-3, rtol=1e-3)

    print("KERNEL_OK")
</pallas_src>

<mosaic_0001>
module attributes {stable_mosaic.version = 11 : i64} {
  func.func @_icnn_kernel(%arg0: i32, %arg1: memref<3xf32, #tpu.memory_space<smem>>, %arg2: memref<3xf32, #tpu.memory_space<smem>>, %arg3: memref<8x2xf32, #tpu.memory_space<vmem>>, %arg4: memref<2x512xf32, #tpu.memory_space<vmem>>, %arg5: memref<2x512xf32, #tpu.memory_space<vmem>>, %arg6: memref<2x128x128xf32, #tpu.memory_space<vmem>>, %arg7: memref<2x128x128xf32, #tpu.memory_space<vmem>>, %arg8: memref<128x128xf32, #tpu.memory_space<vmem>>, %arg9: memref<128x128xf32, #tpu.memory_space<vmem>>, %arg10: memref<8x128xf32, #tpu.memory_space<vmem>>) attributes {dimension_semantics = [#tpu.dimension_semantics<parallel>], iteration_bounds = array<i64: 1>, scalar_prefetch = 0 : i64, scratch_operands = 0 : i64, tpu.core_type = #tpu.core_type<tc>, window_params = [{transform_indices = @transform_0, window_bounds = array<i64: 3>}, {transform_indices = @transform_1, window_bounds = array<i64: 3>}, {transform_indices = @transform_2, window_bounds = array<i64: 8, 2>}, {pipeline_mode = #tpu.pipeline_mode<synchronous>, transform_indices = @transform_3, window_bounds = array<i64: 2, 512>}, {pipeline_mode = #tpu.pipeline_mode<synchronous>, transform_indices = @transform_4, window_bounds = array<i64: 2, 512>}, {pipeline_mode = #tpu.pipeline_mode<synchronous>, transform_indices = @transform_5, window_bounds = array<i64: 2, 128, 128>}, {pipeline_mode = #tpu.pipeline_mode<synchronous>, transform_indices = @transform_6, window_bounds = array<i64: 2, 128, 128>}, {pipeline_mode = #tpu.pipeline_mode<synchronous>, transform_indices = @transform_7, window_bounds = array<i64: 128, 128>}, {pipeline_mode = #tpu.pipeline_mode<synchronous>, transform_indices = @transform_8, window_bounds = array<i64: 128, 128>}, {transform_indices = @transform_9, window_bounds = array<i64: 8, 128>}]} {
    %c0 = arith.constant 0 : index
    %c0_0 = arith.constant 0 : index
    %0 = vector.load %arg3[%c0, %c0_0] : memref<8x2xf32, #tpu.memory_space<vmem>>, vector<8x2xf32>
    %c0_1 = arith.constant 0 : index
    %c0_2 = arith.constant 0 : index
    %1 = vector.load %arg4[%c0_1, %c0_2] : memref<2x512xf32, #tpu.memory_space<vmem>>, vector<2x512xf32>
    %c0_3 = arith.constant 0 : index
    %c0_4 = arith.constant 0 : index
    %2 = vector.load %arg5[%c0_3, %c0_4] : memref<2x512xf32, #tpu.memory_space<vmem>>, vector<2x512xf32>
    %cst = arith.constant 0.000000e+00 : f32
    %3 = vector.broadcast %cst : f32 to vector<2x512xf32>
    %4 = arith.subf %3, %2 : vector<2x512xf32>
    %5 = math.exp %4 : vector<2x512xf32>
    %cst_5 = arith.constant 1.000000e+00 : f32
    %6 = vector.broadcast %cst_5 : f32 to vector<2x512xf32>
    %7 = arith.addf %6, %5 : vector<2x512xf32>
    %cst_6 = arith.constant 1.000000e+00 : f32
    %8 = vector.broadcast %cst_6 : f32 to vector<2x512xf32>
    %9 = arith.divf %8, %7 : vector<2x512xf32>
    %cst_7 = arith.constant 1.200000e+00 : f32
    %10 = vector.broadcast %cst_7 : f32 to vector<2x512xf32>
    %11 = arith.mulf %9, %10 : vector<2x512xf32>
    %cst_8 = arith.constant -1.000000e-01 : f32
    %12 = vector.broadcast %cst_8 : f32 to vector<2x512xf32>
    %13 = arith.addf %11, %12 : vector<2x512xf32>
    %cst_9 = arith.constant 0.000000e+00 : f32
    %cst_10 = arith.constant 1.000000e+00 : f32
    %14 = vector.broadcast %cst_9 : f32 to vector<2x512xf32>
    %15 = arith.maximumf %14, %13 : vector<2x512xf32>
    %16 = vector.broadcast %cst_10 : f32 to vector<2x512xf32>
    %17 = arith.minimumf %16, %15 : vector<2x512xf32>
    %18 = arith.mulf %1, %17 : vector<2x512xf32>
    %cst_11 = arith.constant dense<0.000000e+00> : vector<8x512xf32>
    %19 = tpu.matmul %0, %18, %cst_11 {dimension_numbers = #tpu.dot_dimension_numbers<[1], [0], [0], [1], [0, 0, 1, 1], [], []>} : vector<8x2xf32>, vector<2x512xf32>, vector<8x512xf32> -> vector<8x512xf32>
    %20 = vector.extract_strided_slice %19 {offsets = [0, 0], sizes = [8, 128], strides = [1, 1]} : vector<8x512xf32> to vector<8x128xf32>
    %c0_12 = arith.constant 0 : index
    %21 = memref.load %arg1[%c0_12] : memref<3xf32, #tpu.memory_space<smem>>
    %22 = vector.broadcast %21 : f32 to vector<8x128xf32>
    %23 = arith.addf %20, %22 : vector<8x128xf32>
    %cst_13 = arith.constant 0.000000e+00 : f32
    %24 = vector.broadcast %cst_13 : f32 to vector<8x128xf32>
    %25 = arith.maximumf %23, %24 : vector<8x128xf32>
    %26 = math.absf %23 : vector<8x128xf32>
    %cst_14 = arith.constant 0.000000e+00 : f32
    %27 = vector.broadcast %cst_14 : f32 to vector<8x128xf32>
    %28 = arith.subf %27, %26 : vector<8x128xf32>
    %29 = math.exp %28 : vector<8x128xf32>
    %cst_15 = arith.constant 1.000000e+00 : f32
    %30 = vector.broadcast %cst_15 : f32 to vector<8x128xf32>
    %31 = arith.addf %30, %29 : vector<8x128xf32>
    %32 = math.log %31 : vector<8x128xf32>
    %33 = arith.addf %25, %32 : vector<8x128xf32>
    %c0_16 = arith.constant 0 : index
    %c0_17 = arith.constant 0 : index
    %c0_18 = arith.constant 0 : index
    %34 = vector.load %arg6[%c0_16, %c0_17, %c0_18] : memref<2x128x128xf32, #tpu.memory_space<vmem>>, vector<1x128x128xf32>
    %35 = vector.shape_cast %34 : vector<1x128x128xf32> to vector<128x128xf32>
    %c0_19 = arith.constant 0 : index
    %c0_20 = arith.constant 0 : index
    %c0_21 = arith.constant 0 : index
    %36 = vector.load %arg7[%c0_19, %c0_20, %c0_21] : memref<2x128x128xf32, #tpu.memory_space<vmem>>, vector<1x128x128xf32>
    %37 = vector.shape_cast %36 : vector<1x128x128xf32> to vector<128x128xf32>
    %cst_22 = arith.constant 0.000000e+00 : f32
    %38 = vector.broadcast %cst_22 : f32 to vector<128x128xf32>
    %39 = arith.subf %38, %37 : vector<128x128xf32>
    %40 = math.exp %39 : vector<128x128xf32>
    %cst_23 = arith.constant 1.000000e+00 : f32
    %41 = vector.broadcast %cst_23 : f32 to vector<128x128xf32>
    %42 = arith.addf %41, %40 : vector<128x128xf32>
    %cst_24 = arith.constant 1.000000e+00 : f32
    %43 = vector.broadcast %cst_24 : f32 to vector<128x128xf32>
    %44 = arith.divf %43, %42 : vector<128x128xf32>
    %cst_25 = arith.constant 1.200000e+00 : f32
    %45 = vector.broadcast %cst_25 : f32 to vector<128x128xf32>
    %46 = arith.mulf %44, %45 : vector<128x128xf32>
    %cst_26 = arith.constant -1.000000e-01 : f32
    %47 = vector.broadcast %cst_26 : f32 to vector<128x128xf32>
    %48 = arith.addf %46, %47 : vector<128x128xf32>
    %cst_27 = arith.constant 0.000000e+00 : f32
    %cst_28 = arith.constant 1.000000e+00 : f32
    %49 = vector.broadcast %cst_27 : f32 to vector<128x128xf32>
    %50 = arith.maximumf %49, %48 : vector<128x128xf32>
    %51 = vector.broadcast %cst_28 : f32 to vector<128x128xf32>
    %52 = arith.minimumf %51, %50 : vector<128x128xf32>
    %53 = arith.mulf %35, %52 : vector<128x128xf32>
    %cst_29 = arith.constant dense<0.000000e+00> : vector<8x128xf32>
    %54 = tpu.matmul %33, %53, %cst_29 {dimension_numbers = #tpu.dot_dimension_numbers<[1], [0], [0], [1], [0, 0, 1, 1], [], []>} : vector<8x128xf32>, vector<128x128xf32>, vector<8x128xf32> -> vector<8x128xf32>
    %55 = vector.extract_strided_slice %19 {offsets = [0, 128], sizes = [8, 128], strides = [1, 1]} : vector<8x512xf32> to vector<8x128xf32>
    %56 = arith.addf %54, %55 : vector<8x128xf32>
    %c1 = arith.constant 1 : index
    %57 = memref.load %arg1[%c1] : memref<3xf32, #tpu.memory_space<smem>>
    %58 = vector.broadcast %57 : f32 to vector<8x128xf32>
    %59 = arith.addf %56, %58 : vector<8x128xf32>
    %cst_30 = arith.constant 0.000000e+00 : f32
    %60 = vector.broadcast %cst_30 : f32 to vector<8x128xf32>
    %61 = arith.maximumf %59, %60 : vector<8x128xf32>
    %62 = math.absf %59 : vector<8x128xf32>
    %cst_31 = arith.constant 0.000000e+00 : f32
    %63 = vector.broadcast %cst_31 : f32 to vector<8x128xf32>
    %64 = arith.subf %63, %62 : vector<8x128xf32>
    %65 = math.exp %64 : vector<8x128xf32>
    %cst_32 = arith.constant 1.000000e+00 : f32
    %66 = vector.broadcast %cst_32 : f32 to vector<8x128xf32>
    %67 = arith.addf %66, %65 : vector<8x128xf32>
    %68 = math.log %67 : vector<8x128xf32>
    %69 = arith.addf %61, %68 : vector<8x128xf32>
    %c1_33 = arith.constant 1 : index
    %70 = memref.load %arg2[%c1_33] : memref<3xf32, #tpu.memory_space<smem>>
    %71 = vector.broadcast %70 : f32 to vector<8x128xf32>
    %72 = arith.mulf %71, %69 : vector<8x128xf32>
    %c1_34 = arith.constant 1 : index
    %c0_35 = arith.constant 0 : index
    %c0_36 = arith.constant 0 : index
    %73 = vector.load %arg6[%c1_34, %c0_35, %c0_36] : memref<2x128x128xf32, #tpu.memory_space<vmem>>, vector<1x128x128xf32>
    %74 = vector.shape_cast %73 : vector<1x128x128xf32> to vector<128x128xf32>
    %c1_37 = arith.constant 1 : index
    %c0_38 = arith.constant 0 : index
    %c0_39 = arith.constant 0 : index
    %75 = vector.load %arg7[%c1_37, %c0_38, %c0_39] : memref<2x128x128xf32, #tpu.memory_space<vmem>>, vector<1x128x128xf32>
    %76 = vector.shape_cast %75 : vector<1x128x128xf32> to vector<128x128xf32>
    %cst_40 = arith.constant 0.000000e+00 : f32
    %77 = vector.broadcast %cst_40 : f32 to vector<128x128xf32>
    %78 = arith.subf %77, %76 : vector<128x128xf32>
    %79 = math.exp %78 : vector<128x128xf32>
    %cst_41 = arith.constant 1.000000e+00 : f32
    %80 = vector.broadcast %cst_41 : f32 to vector<128x128xf32>
    %81 = arith.addf %80, %79 : vector<128x128xf32>
    %cst_42 = arith.constant 1.000000e+00 : f32
    %82 = vector.broadcast %cst_42 : f32 to vector<128x128xf32>
    %83 = arith.divf %82, %81 : vector<128x128xf32>
    %cst_43 = arith.constant 1.200000e+00 : f32
    %84 = vector.broadcast %cst_43 : f32 to vector<128x128xf32>
    %85 = arith.mulf %83, %84 : vector<128x128xf32>
    %cst_44 = arith.constant -1.000000e-01 : f32
    %86 = vector.broadcast %cst_44 : f32 to vector<128x128xf32>
    %87 = arith.addf %85, %86 : vector<128x128xf32>
    %cst_45 = arith.constant 0.000000e+00 : f32
    %cst_46 = arith.constant 1.000000e+00 : f32
    %88 = vector.broadcast %cst_45 : f32 to vector<128x128xf32>
    %89 = arith.maximumf %88, %87 : vector<128x128xf32>
    %90 = vector.broadcast %cst_46 : f32 to vector<128x128xf32>
    %91 = arith.minimumf %90, %89 : vector<128x128xf32>
    %92 = arith.mulf %74, %91 : vector<128x128xf32>
    %cst_47 = arith.constant dense<0.000000e+00> : vector<8x128xf32>
    %93 = tpu.matmul %72, %92, %cst_47 {dimension_numbers = #tpu.dot_dimension_numbers<[1], [0], [0], [1], [0, 0, 1, 1], [], []>} : vector<8x128xf32>, vector<128x128xf32>, vector<8x128xf32> -> vector<8x128xf32>
    %94 = vector.extract_strided_slice %19 {offsets = [0, 256], sizes = [8, 128], strides = [1, 1]} : vector<8x512xf32> to vector<8x128xf32>
    %95 = arith.addf %93, %94 : vector<8x128xf32>
    %c2 = arith.constant 2 : index
    %96 = memref.load %arg1[%c2] : memref<3xf32, #tpu.memory_space<smem>>
    %97 = vector.broadcast %96 : f32 to vector<8x128xf32>
    %98 = arith.addf %95, %97 : vector<8x128xf32>
    %cst_48 = arith.constant 0.000000e+00 : f32
    %99 = vector.broadcast %cst_48 : f32 to vector<8x128xf32>
    %100 = arith.maximumf %98, %99 : vector<8x128xf32>
    %101 = math.absf %98 : vector<8x128xf32>
    %cst_49 = arith.constant 0.000000e+00 : f32
    %102 = vector.broadcast %cst_49 : f32 to vector<8x128xf32>
    %103 = arith.subf %102, %101 : vector<8x128xf32>
    %104 = math.exp %103 : vector<8x128xf32>
    %cst_50 = arith.constant 1.000000e+00 : f32
    %105 = vector.broadcast %cst_50 : f32 to vector<8x128xf32>
    %106 = arith.addf %105, %104 : vector<8x128xf32>
    %107 = math.log %106 : vector<8x128xf32>
    %108 = arith.addf %100, %107 : vector<8x128xf32>
    %c2_51 = arith.constant 2 : index
    %109 = memref.load %arg2[%c2_51] : memref<3xf32, #tpu.memory_space<smem>>
    %110 = vector.broadcast %109 : f32 to vector<8x128xf32>
    %111 = arith.mulf %110, %108 : vector<8x128xf32>
    %c0_52 = arith.constant 0 : index
    %c0_53 = arith.constant 0 : index
    %112 = vector.load %arg8[%c0_52, %c0_53] : memref<128x128xf32, #tpu.memory_space<vmem>>, vector<128x128xf32>
    %c0_54 = arith.constant 0 : index
    %c0_55 = arith.constant 0 : index
    %113 = vector.load %arg9[%c0_54, %c0_55] : memref<128x128xf32, #tpu.memory_space<vmem>>, vector<128x128xf32>
    %cst_56 = arith.constant 0.000000e+00 : f32
    %114 = vector.broadcast %cst_56 : f32 to vector<128x128xf32>
    %115 = arith.subf %114, %113 : vector<128x128xf32>
    %116 = math.exp %115 : vector<128x128xf32>
    %cst_57 = arith.constant 1.000000e+00 : f32
    %117 = vector.broadcast %cst_57 : f32 to vector<128x128xf32>
    %118 = arith.addf %117, %116 : vector<128x128xf32>
    %cst_58 = arith.constant 1.000000e+00 : f32
    %119 = vector.broadcast %cst_58 : f32 to vector<128x128xf32>
    %120 = arith.divf %119, %118 : vector<128x128xf32>
    %cst_59 = arith.constant 1.200000e+00 : f32
    %121 = vector.broadcast %cst_59 : f32 to vector<128x128xf32>
    %122 = arith.mulf %120, %121 : vector<128x128xf32>
    %cst_60 = arith.constant -1.000000e-01 : f32
    %123 = vector.broadcast %cst_60 : f32 to vector<128x128xf32>
    %124 = arith.addf %122, %123 : vector<128x128xf32>
    %cst_61 = arith.constant 0.000000e+00 : f32
    %cst_62 = arith.constant 1.000000e+00 : f32
    %125 = vector.broadcast %cst_61 : f32 to vector<128x128xf32>
    %126 = arith.maximumf %125, %124 : vector<128x128xf32>
    %127 = vector.broadcast %cst_62 : f32 to vector<128x128xf32>
    %128 = arith.minimumf %127, %126 : vector<128x128xf32>
    %129 = arith.mulf %112, %128 : vector<128x128xf32>
    %cst_63 = arith.constant dense<0.000000e+00> : vector<8x128xf32>
    %130 = tpu.matmul %111, %129, %cst_63 {dimension_numbers = #tpu.dot_dimension_numbers<[1], [0], [0], [1], [0, 0, 1, 1], [], []>} : vector<8x128xf32>, vector<128x128xf32>, vector<8x128xf32> -> vector<8x128xf32>
    %131 = vector.extract_strided_slice %19 {offsets = [0, 384], sizes = [8, 128], strides = [1, 1]} : vector<8x512xf32> to vector<8x128xf32>
    %132 = arith.addf %130, %131 : vector<8x128xf32>
    %c0_64 = arith.constant 0 : index
    %c0_65 = arith.constant 0 : index
    %133 = vector.load %arg10[%c0_64, %c0_65] : memref<8x128xf32, #tpu.memory_space<vmem>>, vector<8x128xf32>
    tpu.vector_store %arg10[%c0_64, %c0_65], %132 {strides = array<i32>} : memref<8x128xf32, #tpu.memory_space<vmem>>, vector<8x128xf32>,
    return
  }
  func.func @transform_0(%arg0: i32) -> i32 {
    %c0_i32 = arith.constant 0 : i32
    %c0_i32_0 = arith.constant 0 : i32
    return %c0_i32 : i32
  }
  func.func @transform_1(%arg0: i32) -> i32 {
    %c0_i32 = arith.constant 0 : i32
    %c0_i32_0 = arith.constant 0 : i32
    return %c0_i32 : i32
  }
  func.func @transform_2(%arg0: i32) -> (i32, i32) {
    %c0_i32 = arith.constant 0 : i32
    %c0_i32_0 = arith.constant 0 : i32
    return %arg0, %c0_i32 : i32, i32
  }
  func.func @transform_3(%arg0: i32) -> (i32, i32) {
    %c0_i32 = arith.constant 0 : i32
    %c0_i32_0 = arith.constant 0 : i32
    %c0_i32_1 = arith.constant 0 : i32
    return %c0_i32, %c0_i32_0 : i32, i32
  }
  func.func @transform_4(%arg0: i32) -> (i32, i32) {
    %c0_i32 = arith.constant 0 : i32
    %c0_i32_0 = arith.constant 0 : i32
    %c0_i32_1 = arith.constant 0 : i32
    return %c0_i32, %c0_i32_0 : i32, i32
  }
  func.func @transform_5(%arg0: i32) -> (i32, i32, i32) {
    %c0_i32 = arith.constant 0 : i32
    %c0_i32_0 = arith.constant 0 : i32
    %c0_i32_1 = arith.constant 0 : i32
    %c0_i32_2 = arith.constant 0 : i32
    return %c0_i32, %c0_i32_0, %c0_i32_1 : i32, i32, i32
  }
  func.func @transform_6(%arg0: i32) -> (i32, i32, i32) {
    %c0_i32 = arith.constant 0 : i32
    %c0_i32_0 = arith.constant 0 : i32
    %c0_i32_1 = arith.constant 0 : i32
    %c0_i32_2 = arith.constant 0 : i32
    return %c0_i32, %c0_i32_0, %c0_i32_1 : i32, i32, i32
  }
  func.func @transform_7(%arg0: i32) -> (i32, i32) {
    %c0_i32 = arith.constant 0 : i32
    %c0_i32_0 = arith.constant 0 : i32
    %c0_i32_1 = arith.constant 0 : i32
    return %c0_i32, %c0_i32_0 : i32, i32
  }
  func.func @transform_8(%arg0: i32) -> (i32, i32) {
    %c0_i32 = arith.constant 0 : i32
    %c0_i32_0 = arith.constant 0 : i32
    %c0_i32_1 = arith.constant 0 : i32
    return %c0_i32, %c0_i32_0 : i32, i32
  }
  func.func @transform_9(%arg0: i32) -> (i32, i32) {
    %c0_i32 = arith.constant 0 : i32
    %c0_i32_0 = arith.constant 0 : i32
    return %arg0, %c0_i32 : i32, i32
  }
}

</mosaic_0001>

<llo_original>
// kernel: tpu_custom_call.1
$region0: #{tpu_custom_call.1}
  #allocation0 [shape = 'u32[]', space=smem, size = 0x4, offset = 0x4, fixed_abs, tag = 'smem constant byte address 0x4 - core index']
  #allocation1 [shape = 'u32[144,128]{1,0:T(1,128)}', space=vmem, size = 0x12000, scoped, tag = 'internal scratch']
  %s0 = inlined_call_operand.vmem [shape: f32[3], index: 0, kind: input, shape index: {}]
  %s1 = inlined_call_operand.hbm [shape: f32[3], index: 1, kind: input, shape index: {}]
  %s2 = inlined_call_operand.vmem [shape: f32[8,2], index: 2, kind: input, shape index: {}]
  %s3 = inlined_call_operand.vmem [shape: f32[2,512], index: 3, kind: input, shape index: {}]
  %s4 = inlined_call_operand.vmem [shape: f32[2,512], index: 4, kind: input, shape index: {}]
  %s5 = inlined_call_operand.hbm [shape: f32[2,128,128], index: 5, kind: input, shape index: {}]
  %s6 = inlined_call_operand.hbm [shape: f32[2,128,128], index: 6, kind: input, shape index: {}]
  %s7 = inlined_call_operand.hbm [shape: f32[128,128], index: 7, kind: input, shape index: {}]
  %s8 = inlined_call_operand.hbm [shape: f32[128,128], index: 8, kind: input, shape index: {}]
  %s9 = inlined_call_operand.hbm [shape: f32[8,128], index: 9, kind: output, shape index: {}]
  %s10 = sld [smem:[#allocation0]]
  $region70: #{tpu_custom_call.1} parent=0
    _
  %s12 = ssub.s32 1, %s10
  %s13 = scalar_select 0, %s12, %s10
  $region1: #{tpu_custom_call.1} parent=0
    #allocation2 [shape = 'u8[512]{0}', space=smem, size = 0x200, scoped, tag = 'input window, operand 0, single buffered']
    #allocation3 [shape = 's32[1]{0}', space=sflag, size = 0x4, scoped, tag = 'scoped memory for tpu_custom_call.1']
    #allocation4 [shape = 's32[1]{0}', space=sflag, size = 0x4, scoped, tag = 'scoped memory for tpu_custom_call.1']
    #allocation5 [shape = 's32[1]{0}', space=sflag, size = 0x4, scoped, tag = 'scoped memory for tpu_custom_call.1']
    #allocation6 [shape = 's32[1]{0}', space=sflag, size = 0x4, scoped, tag = 'scoped memory for tpu_custom_call.1']
    #allocation7 [shape = 'u8[512]{0}', space=smem, size = 0x200, scoped, tag = 'input window, operand 1, single buffered']
    #allocation8 [shape = 'u8[131072]{0}', space=vmem, size = 0x20000, scoped, tag = 'input window, operand 5, single buffered']
    #allocation9 [shape = 'u8[131072]{0}', space=vmem, size = 0x20000, scoped, tag = 'input window, operand 6, single buffered']
    #allocation10 [shape = 's32[1]{0}', space=sflag, size = 0x4, scoped, tag = 'scoped memory for tpu_custom_call.1']
    #allocation11 [shape = 'u8[65536]{0}', space=vmem, size = 0x10000, scoped, tag = 'input window, operand 7, single buffered']
    #allocation12 [shape = 'u8[65536]{0}', space=vmem, size = 0x10000, scoped, tag = 'input window, operand 8, single buffered']
    #allocation13 [shape = 's32[1]{0}', space=sflag, size = 0x4, scoped, tag = 'scoped memory for tpu_custom_call.1']
    #allocation14 [shape = 'u8[4096]{0}', space=vmem, size = 0x1000, scoped, tag = 'output window, operand 0, single buffered']
    %14 = vsyncpa [#allocation6], 0
    %15 = vsyncpa [#allocation5], 0
    %16 = vsyncpa [#allocation3], 0
    %17 = vsyncpa [#allocation10], 0
    %18 = vsyncpa [#allocation13], 0
    %19 = vsyncpa [#allocation4], 0
    // Predicated region
    $region2: #{tpu_custom_call.1} parent=1 // pred_check
      _
    $region3: #{tpu_custom_call.1} parent=1 // pred_check_branch
      %21 = sbr.rel (0) target = $region5
    $region4: #{tpu_custom_call.1} parent=1 // pred_region
      %s23 = ssub.s32 16, 16
      %24 = vsyncadd [#allocation6], %s23
      %s26 = sshll.u32 %s0, 4
      %s27 = int_to_ptr.vmem [resolvable:$true] %s26
      %29 = dma.vmem_to_smem %s27, 16, [#allocation2], [#allocation6]
    $region5: #{tpu_custom_call.1} parent=1 // pred_fallthru
      _
    // Predicated region
    $region6: #{tpu_custom_call.1} parent=1 // pred_check
      _
    $region7: #{tpu_custom_call.1} parent=1 // pred_check_branch
      %31 = sbr.rel (0) target = $region9
    $region8: #{tpu_custom_call.1} parent=1 // pred_region
      %s33 = ssub.s32 16, 16
      %34 = vsyncadd [#allocation5], %s33
      %37 = dma.hbm_to_smem %s1, 16, [#allocation7], [#allocation5]
    $region9: #{tpu_custom_call.1} parent=1 // pred_fallthru
      _
    // Predicated region
    $region10: #{tpu_custom_call.1} parent=1 // pred_check
      _
    $region11: #{tpu_custom_call.1} parent=1 // pred_check_branch
      %39 = sbr.rel (0) target = $region13
    $region12: #{tpu_custom_call.1} parent=1 // pred_region
      _
    $region13: #{tpu_custom_call.1} parent=1 // pred_fallthru
      _
    // Predicated region
    $region14: #{tpu_custom_call.1} parent=1 // pred_check
      _
    $region15: #{tpu_custom_call.1} parent=1 // pred_check_branch
      %41 = sbr.rel (0) target = $region17
    $region16: #{tpu_custom_call.1} parent=1 // pred_region
      _
    $region17: #{tpu_custom_call.1} parent=1 // pred_fallthru
      _
    // Predicated region
    $region18: #{tpu_custom_call.1} parent=1 // pred_check
      _
    $region19: #{tpu_custom_call.1} parent=1 // pred_check_branch
      %43 = sbr.rel (0) target = $region21
    $region20: #{tpu_custom_call.1} parent=1 // pred_region
      _
    $region21: #{tpu_custom_call.1} parent=1 // pred_fallthru
      _
    // Predicated region
    $region22: #{tpu_custom_call.1} parent=1 // pred_check
      _
    $region23: #{tpu_custom_call.1} parent=1 // pred_check_branch
      %45 = sbr.rel (0) target = $region25
    $region24: #{tpu_custom_call.1} parent=1 // pred_region
      %s47 = ssub.s32 4096, 4096
      %48 = vsyncadd [#allocation3], %s47
      %s49 = sshll.u32 [#allocation8], 4
      %s50 = int_to_ptr.vmem [resolvable:$true] %s49
      %55 = dma.hbm_to_vmem [thread:$0]  %s5, 4096, %s50, [#allocation3], 128, 128, 8
    $region25: #{tpu_custom_call.1} parent=1 // pred_fallthru
      _
    // Predicated region
    $region26: #{tpu_custom_call.1} parent=1 // pred_check
      _
    $region27: #{tpu_custom_call.1} parent=1 // pred_check_branch
      %57 = sbr.rel (0) target = $region29
    $region28: #{tpu_custom_call.1} parent=1 // pred_region
      %s59 = ssub.s32 4096, 4096
      %60 = vsyncadd [#allocation10], %s59
      %s61 = sshll.u32 [#allocation9], 4
      %s62 = int_to_ptr.vmem [resolvable:$true] %s61
      %67 = dma.hbm_to_vmem [thread:$0]  %s6, 4096, %s62, [#allocation10], 128, 128, 8
    $region29: #{tpu_custom_call.1} parent=1 // pred_fallthru
      _
    // Predicated region
    $region30: #{tpu_custom_call.1} parent=1 // pred_check
      _
    $region31: #{tpu_custom_call.1} parent=1 // pred_check_branch
      %69 = sbr.rel (0) target = $region33
    $region32: #{tpu_custom_call.1} parent=1 // pred_region
      %s71 = ssub.s32 2048, 2048
      %72 = vsyncadd [#allocation10], %s71
      %s73 = sshll.u32 [#allocation11], 4
      %s74 = int_to_ptr.vmem [resolvable:$true] %s73
      %79 = dma.hbm_to_vmem [thread:$0]  %s7, 2048, %s74, [#allocation10], 128, 128, 8
    $region33: #{tpu_custom_call.1} parent=1 // pred_fallthru
      _
    // Predicated region
    $region34: #{tpu_custom_call.1} parent=1 // pred_check
      _
    $region35: #{tpu_custom_call.1} parent=1 // pred_check_branch
      %81 = sbr.rel (0) target = $region37
    $region36: #{tpu_custom_call.1} parent=1 // pred_region
      %s83 = ssub.s32 2048, 2048
      %84 = vsyncadd [#allocation13], %s83
      %s85 = sshll.u32 [#allocation12], 4
      %s86 = int_to_ptr.vmem [resolvable:$true] %s85
      %91 = dma.hbm_to_vmem [thread:$0]  %s8, 2048, %s86, [#allocation13], 128, 128, 8
    $region37: #{tpu_custom_call.1} parent=1 // pred_fallthru
      _
    // Predicated region
    $region38: #{tpu_custom_call.1} parent=1 // pred_check
      _
    $region39: #{tpu_custom_call.1} parent=1 // pred_check_branch
      %93 = sbr.rel (0) target = $region41
    $region40: #{tpu_custom_call.1} parent=1 // pred_region
      %94 = dma.done [#allocation6], 16
    $region41: #{tpu_custom_call.1} parent=1 // pred_fallthru
      _
    // Predicated region
    $region42: #{tpu_custom_call.1} parent=1 // pred_check
      _
    $region43: #{tpu_custom_call.1} parent=1 // pred_check_branch
      %96 = sbr.rel (0) target = $region45
    $region44: #{tpu_custom_call.1} parent=1 // pred_region
      %97 = dma.done [#allocation5], 16
    $region45: #{tpu_custom_call.1} parent=1 // pred_fallthru
      _
    // Predicated region
    $region46: #{tpu_custom_call.1} parent=1 // pred_check
      _
    $region47: #{tpu_custom_call.1} parent=1 // pred_check_branch
      %99 = sbr.rel (0) target = $region49
    $region48: #{tpu_custom_call.1} parent=1 // pred_region
      %100 = dma.done [#allocation3], 4096
    $region49: #{tpu_custom_call.1} parent=1 // pred_fallthru
      _
    // Predicated region
    $region50: #{tpu_custom_call.1} parent=1 // pred_check
      _
    $region51: #{tpu_custom_call.1} parent=1 // pred_check_branch
      %102 = sbr.rel (0) target = $region53
    $region52: #{tpu_custom_call.1} parent=1 // pred_region
      %103 = dma.done [#allocation10], 4096
    $region53: #{tpu_custom_call.1} parent=1 // pred_fallthru
      _
    // Predicated region
    $region54: #{tpu_custom_call.1} parent=1 // pred_check
      _
    $region55: #{tpu_custom_call.1} parent=1 // pred_check_branch
      %105 = sbr.rel (0) target = $region57
    $region56: #{tpu_custom_call.1} parent=1 // pred_region
      %106 = dma.done [#allocation10], 2048
    $region57: #{tpu_custom_call.1} parent=1 // pred_fallthru
      _
    // Predicated region
    $region58: #{tpu_custom_call.1} parent=1 // pred_check
      _
    $region59: #{tpu_custom_call.1} parent=1 // pred_check_branch
      %108 = sbr.rel (0) target = $region61
    $region60: #{tpu_custom_call.1} parent=1 // pred_region
      %109 = dma.done [#allocation13], 2048
    $region61: #{tpu_custom_call.1} parent=1 // pred_fallthru
      _
    %110 = sfence
    %v111 = vld [vmem:[%s2] sm:$0xff]
    %v112 = vld [vmem:[%s3] sm:$0xff]
    %v113 = vld [vmem:[%s4] sm:$0xff]
    %v114 = vsub.f32 0.0, %v113
    %v115 = vmul.f32 %v114, 1.442695
    %v116 = vpow.pop %v115
    %v117 = vadd.f32 %v116, 1.0
    %v118 = vrcp.pop %v117
    %v119 = vmul.f32 1.0, %v118
    %v120 = vmul.f32 %v119, 1.2
    %v121 = vadd.f32 %v120, -0.1
    %v122 = vmax.f32 %v121, 0.0
    %v123 = vmin.f32 %v122, 1.0
    %v124 = vmul.f32 %v112, %v123
    %v126 = vcombine.high %v124, %v124
    %v128 = vunpack.c.l.s4 1983009808
    %v129 = vunpack.c.0.s8 %v128
    %v130 = vlaneseq
    %v131 = vshrl.u32 %v130, 7
    %v132 = vsub.s32 %v129, %v131
    %v133 = vrot.slane %v124, %v132
    %v135 = vunpack.c.l.s4 1983009808
    %v136 = vunpack.c.0.s8 %v135
    %v137 = vlaneseq
    %v138 = vshrl.u32 %v137, 7
    %v139 = vsub.s32 %v136, %v138
    %v140 = vrot.slane %v126, %v139
    %v141 = vcombine.high %v133, %v133
    %v142 = vcombine.high %v140, %v140
    %vm143 = vcmask 15360
    %v145 = vsel %vm143, %v111, 0
    %vm147 = vcmask 1041408
    %v148 = vsel %vm147, %v133, 0
    %v150 = vsel %vm147, %v141, 0
    %v152 = vsel %vm147, %v140, 0
    %v154 = vsel %vm147, %v142, 0
    %156 = vmatprep.subr.mxu0 %v150
    %157 = vmatpush1.msra.mxu0 %v148
    %158 = vmatprep.subr.mxu0 0.0
    %159 = vmatpush1.msra.mxu0 0.0
    %160 = vmatprep.subr.mxu0 0.0
    %161 = vmatpush1.msra.mxu0 0.0
    %162 = vmatprep.subr.mxu0 0.0
    %163 = vmatpush1.msra.mxu0 0.0
    %164 = vmatprep.subr.mxu0 0.0
    %165 = vmatpush1.msra.mxu0 0.0
    %166 = vmatprep.subr.mxu0 0.0
    %167 = vmatpush1.msra.mxu0 0.0
    %168 = vmatprep.subr.mxu0 0.0
    %169 = vmatpush1.msra.mxu0 0.0
    %170 = vmatprep.subr.mxu0 0.0
    %171 = vmatpush1.msra.mxu0 0.0
    %172 = vmatprep.subr.mxu0 0.0
    %173 = vmatpush1.msra.mxu0 0.0
    %174 = vmatprep.subr.mxu0 0.0
    %175 = vmatpush1.msra.mxu0 0.0
    %176 = vmatprep.subr.mxu0 0.0
    %177 = vmatpush1.msra.mxu0 0.0
    %178 = vmatprep.subr.mxu0 0.0
    %179 = vmatpush1.msra.mxu0 0.0
    %180 = vmatprep.subr.mxu0 0.0
    %181 = vmatpush1.msra.mxu0 0.0
    %182 = vmatprep.subr.mxu0 0.0
    %183 = vmatpush1.msra.mxu0 0.0
    %184 = vmatprep.subr.mxu0 0.0
    %185 = vmatpush1.msra.mxu0 0.0
    %186 = vmatprep.subr.mxu0 0.0
    %187 = vmatpush1.msra.mxu0 0.0
    %188 = vmatprep.subr.mxu0 0.0
    %189 = vmatpush1.msra.mxu0 0.0
    %190 = vmatprep.subr.mxu0 0.0
    %191 = vmatpush1.msra.mxu0 0.0
    %192 = vmatprep.subr.mxu0 0.0
    %193 = vmatpush1.msra.mxu0 0.0
    %194 = vmatprep.subr.mxu0 0.0
    %195 = vmatpush1.msra.mxu0 0.0
    %196 = vmatprep.subr.mxu0 0.0
    %197 = vmatpush1.msra.mxu0 0.0
    %198 = vmatprep.subr.mxu0 0.0
    %199 = vmatpush1.msra.mxu0 0.0
    %200 = vmatprep.subr.mxu0 0.0
    %201 = vmatpush1.msra.mxu0 0.0
    %202 = vmatprep.subr.mxu0 0.0
    %203 = vmatpush1.msra.mxu0 0.0
    %204 = vmatprep.subr.mxu0 0.0
    %205 = vmatpush1.msra.mxu0 0.0
    %206 = vmatprep.subr.mxu0 0.0
    %207 = vmatpush1.msra.mxu0 0.0
    %208 = vmatprep.subr.mxu0 0.0
    %209 = vmatpush1.msra.mxu0 0.0
    %210 = vmatprep.subr.mxu0 0.0
    %211 = vmatpush1.msra.mxu0 0.0
    %212 = vmatprep.subr.mxu0 0.0
    %213 = vmatpush1.msra.mxu0 0.0
    %214 = vmatprep.subr.mxu0 0.0
    %215 = vmatpush1.msra.mxu0 0.0
    %216 = vmatprep.subr.mxu0 0.0
    %217 = vmatpush1.msra.mxu0 0.0
    %218 = vmatprep.subr.mxu0 0.0
    %219 = vmatpush1.msra.mxu0 0.0
    %220 = vmatprep.mubr.f32.mxu0 0.0
    %221 = vmatmul.mubr.f32.gmra.mrb[0].mxu0 %v145
    %v222 = vpop.f32.mrb[0].mxu0
    %v223 = vadd.f32 0.0, %v222
    %v224 = vpop.f32.mrb[0].mxu0
    %v225 = vadd.f32 0.0, %v224
    %226 = vdwg.mxu0
    %227 = vmatprep.subr.mxu0 %v154
    %228 = vmatpush1.msra.mxu0 %v152
    %229 = vmatprep.subr.mxu0 0.0
    %230 = vmatpush1.msra.mxu0 0.0
    %231 = vmatprep.subr.mxu0 0.0
    %232 = vmatpush1.msra.mxu0 0.0
    %233 = vmatprep.subr.mxu0 0.0
    %234 = vmatpush1.msra.mxu0 0.0
    %235 = vmatprep.subr.mxu0 0.0
    %236 = vmatpush1.msra.mxu0 0.0
    %237 = vmatprep.subr.mxu0 0.0
    %238 = vmatpush1.msra.mxu0 0.0
    %239 = vmatprep.subr.mxu0 0.0
    %240 = vmatpush1.msra.mxu0 0.0
    %241 = vmatprep.subr.mxu0 0.0
    %242 = vmatpush1.msra.mxu0 0.0
    %243 = vmatprep.subr.mxu0 0.0
    %244 = vmatpush1.msra.mxu0 0.0
    %245 = vmatprep.subr.mxu0 0.0
    %246 = vmatpush1.msra.mxu0 0.0
    %247 = vmatprep.subr.mxu0 0.0
    %248 = vmatpush1.msra.mxu0 0.0
    %249 = vmatprep.subr.mxu0 0.0
    %250 = vmatpush1.msra.mxu0 0.0
    %251 = vmatprep.subr.mxu0 0.0
    %252 = vmatpush1.msra.mxu0 0.0
    %253 = vmatprep.subr.mxu0 0.0
    %254 = vmatpush1.msra.mxu0 0.0
    %255 = vmatprep.subr.mxu0 0.0
    %256 = vmatpush1.msra.mxu0 0.0
    %257 = vmatprep.subr.mxu0 0.0
    %258 = vmatpush1.msra.mxu0 0.0
    %259 = vmatprep.subr.mxu0 0.0
    %260 = vmatpush1.msra.mxu0 0.0
    %261 = vmatprep.subr.mxu0 0.0
    %262 = vmatpush1.msra.mxu0 0.0
    %263 = vmatprep.subr.mxu0 0.0
    %264 = vmatpush1.msra.mxu0 0.0
    %265 = vmatprep.subr.mxu0 0.0
    %266 = vmatpush1.msra.mxu0 0.0
    %267 = vmatprep.subr.mxu0 0.0
    %268 = vmatpush1.msra.mxu0 0.0
    %269 = vmatprep.subr.mxu0 0.0
    %270 = vmatpush1.msra.mxu0 0.0
    %271 = vmatprep.subr.mxu0 0.0
    %272 = vmatpush1.msra.mxu0 0.0
    %273 = vmatprep.subr.mxu0 0.0
    %274 = vmatpush1.msra.mxu0 0.0
    %275 = vmatprep.subr.mxu0 0.0
    %276 = vmatpush1.msra.mxu0 0.0
    %277 = vmatprep.subr.mxu0 0.0
    %278 = vmatpush1.msra.mxu0 0.0
    %279 = vmatprep.subr.mxu0 0.0
    %280 = vmatpush1.msra.mxu0 0.0
    %281 = vmatprep.subr.mxu0 0.0
    %282 = vmatpush1.msra.mxu0 0.0
    %283 = vmatprep.subr.mxu0 0.0
    %284 = vmatpush1.msra.mxu0 0.0
    %285 = vmatprep.subr.mxu0 0.0
    %286 = vmatpush1.msra.mxu0 0.0
    %287 = vmatprep.subr.mxu0 0.0
    %288 = vmatpush1.msra.mxu0 0.0
    %289 = vmatprep.subr.mxu0 0.0
    %290 = vmatpush1.msra.mxu0 0.0
    %291 = vmatprep.mubr.f32.mxu0 0.0
    %292 = vmatmul.mubr.f32.gmra.mrb[0].mxu0 %v145
    %v293 = vpop.f32.mrb[0].mxu0
    %v294 = vadd.f32 0.0, %v293
    %v295 = vpop.f32.mrb[0].mxu0
    %v296 = vadd.f32 0.0, %v295
    %297 = vdwg.mxu0
    %s298 = sld [smem:[#allocation2]]
    %v299 = vstv %s298
    %v300 = vadd.f32 %v223, %v299
    %v301 = vmax.f32 %v300, 0.0
    %v302 = vand.u32 2147483647, %v300
    %v303 = vsub.f32 0.0, %v302
    %v304 = vmul.f32 %v303, 1.442695
    %v305 = vpow.pop %v304
    %v306 = vadd.f32 %v305, 1.0
    %v307 = vlog2.pop %v306
    %v308 = vmul.f32 %v307, 0.6931472
    %v309 = vadd.f32 %v301, %v308
    %v310 = vld [vmem:[#allocation8] sm:$0xff]
    %v311 = vld [vmem:[#allocation8 + $0x8] sm:$0xff]
    %v312 = vld [vmem:[#allocation8 + $0x10] sm:$0xff]
    %v313 = vld [vmem:[#allocation8 + $0x18] sm:$0xff]
    %v314 = vld [vmem:[#allocation8 + $0x20] sm:$0xff]
    %v315 = vld [vmem:[#allocation8 + $0x28] sm:$0xff]
    %v316 = vld [vmem:[#allocation8 + $0x30] sm:$0xff]
    %v317 = vld [vmem:[#allocation8 + $0x38] sm:$0xff]
    %v318 = vld [vmem:[#allocation8 + $0x40] sm:$0xff]
    %v319 = vld [vmem:[#allocation8 + $0x48] sm:$0xff]
    %v320 = vld [vmem:[#allocation8 + $0x50] sm:$0xff]
    %v321 = vld [vmem:[#allocation8 + $0x58] sm:$0xff]
    %v322 = vld [vmem:[#allocation8 + $0x60] sm:$0xff]
    %v323 = vld [vmem:[#allocation8 + $0x68] sm:$0xff]
    %v324 = vld [vmem:[#allocation8 + $0x70] sm:$0xff]
    %v325 = vld [vmem:[#allocation8 + $0x78] sm:$0xff]
    %v326 = vld [vmem:[#allocation9] sm:$0xff]
    %v327 = vld [vmem:[#allocation9 + $0x8] sm:$0xff]
    %v328 = vld [vmem:[#allocation9 + $0x10] sm:$0xff]
    %v329 = vld [vmem:[#allocation9 + $0x18] sm:$0xff]
    %v330 = vld [vmem:[#allocation9 + $0x20] sm:$0xff]
    %v331 = vld [vmem:[#allocation9 + $0x28] sm:$0xff]
    %v332 = vld [vmem:[#allocation9 + $0x30] sm:$0xff]
    %v333 = vld [vmem:[#allocation9 + $0x38] sm:$0xff]
    %v334 = vld [vmem:[#allocation9 + $0x40] sm:$0xff]
    %v335 = vld [vmem:[#allocation9 + $0x48] sm:$0xff]
    %v336 = vld [vmem:[#allocation9 + $0x50] sm:$0xff]
    %v337 = vld [vmem:[#allocation9 + $0x58] sm:$0xff]
    %v338 = vld [vmem:[#allocation9 + $0x60] sm:$0xff]
    %v339 = vld [vmem:[#allocation9 + $0x68] sm:$0xff]
    %v340 = vld [vmem:[#allocation9 + $0x70] sm:$0xff]
    %v341 = vld [vmem:[#allocation9 + $0x78] sm:$0xff]
    %v342 = vsub.f32 0.0, %v326
    %v343 = vsub.f32 0.0, %v327
    %v344 = vsub.f32 0.0, %v328
    %v345 = vsub.f32 0.0, %v329
    %v346 = vsub.f32 0.0, %v330
    %v347 = vsub.f32 0.0, %v331
    %v348 = vsub.f32 0.0, %v332
    %v349 = vsub.f32 0.0, %v333
    %v350 = vsub.f32 0.0, %v334
    %v351 = vsub.f32 0.0, %v335
    %v352 = vsub.f32 0.0, %v336
    %v353 = vsub.f32 0.0, %v337
    %v354 = vsub.f32 0.0, %v338
    %v355 = vsub.f32 0.0, %v339
    %v356 = vsub.f32 0.0, %v340
    %v357 = vsub.f32 0.0, %v341
    %v358 = vmul.f32 %v342, 1.442695
    %v359 = vpow.pop %v358
    %v360 = vmul.f32 %v343, 1.442695
    %v361 = vpow.pop %v360
    %v362 = vmul.f32 %v344, 1.442695
    %v363 = vpow.pop %v362
    %v364 = vmul.f32 %v345, 1.442695
    %v365 = vpow.pop %v364
    %v366 = vmul.f32 %v346, 1.442695
    %v367 = vpow.pop %v366
    %v368 = vmul.f32 %v347, 1.442695
    %v369 = vpow.pop %v368
    %v370 = vmul.f32 %v348, 1.442695
    %v371 = vpow.pop %v370
    %v372 = vmul.f32 %v349, 1.442695
    %v373 = vpow.pop %v372
    %v374 = vmul.f32 %v350, 1.442695
    %v375 = vpow.pop %v374
    %v376 = vmul.f32 %v351, 1.442695
    %v377 = vpow.pop %v376
    %v378 = vmul.f32 %v352, 1.442695
    %v379 = vpow.pop %v378
    %v380 = vmul.f32 %v353, 1.442695
    %v381 = vpow.pop %v380
    %v382 = vmul.f32 %v354, 1.442695
    %v383 = vpow.pop %v382
    %v384 = vmul.f32 %v355, 1.442695
    %v385 = vpow.pop %v384
    %v386 = vmul.f32 %v356, 1.442695
    %v387 = vpow.pop %v386
    %v388 = vmul.f32 %v357, 1.442695
    %v389 = vpow.pop %v388
    %v390 = vadd.f32 %v359, 1.0
    %v391 = vadd.f32 %v361, 1.0
    %v392 = vadd.f32 %v363, 1.0
    %v393 = vadd.f32 %v365, 1.0
    %v394 = vadd.f32 %v367, 1.0
    %v395 = vadd.f32 %v369, 1.0
    %v396 = vadd.f32 %v371, 1.0
    %v397 = vadd.f32 %v373, 1.0
    %v398 = vadd.f32 %v375, 1.0
    %v399 = vadd.f32 %v377, 1.0
    %v400 = vadd.f32 %v379, 1.0
    %v401 = vadd.f32 %v381, 1.0
    %v402 = vadd.f32 %v383, 1.0
    %v403 = vadd.f32 %v385, 1.0
    %v404 = vadd.f32 %v387, 1.0
    %v405 = vadd.f32 %v389, 1.0
    %v406 = vrcp.pop %v390
    %v407 = vmul.f32 1.0, %v406
    %v408 = vrcp.pop %v391
    %v409 = vmul.f32 1.0, %v408
    %v410 = vrcp.pop %v392
    %v411 = vmul.f32 1.0, %v410
    %v412 = vrcp.pop %v393
    %v413 = vmul.f32 1.0, %v412
    %v414 = vrcp.pop %v394
    %v415 = vmul.f32 1.0, %v414
    %v416 = vrcp.pop %v395
    %v417 = vmul.f32 1.0, %v416
    %v418 = vrcp.pop %v396
    %v419 = vmul.f32 1.0, %v418
    %v420 = vrcp.pop %v397
    %v421 = vmul.f32 1.0, %v420
    %v422 = vrcp.pop %v398
    %v423 = vmul.f32 1.0, %v422
    %v424 = vrcp.pop %v399
    %v425 = vmul.f32 1.0, %v424
    %v426 = vrcp.pop %v400
    %v427 = vmul.f32 1.0, %v426
    %v428 = vrcp.pop %v401
    %v429 = vmul.f32 1.0, %v428
    %v430 = vrcp.pop %v402
    %v431 = vmul.f32 1.0, %v430
    %v432 = vrcp.pop %v403
    %v433 = vmul.f32 1.0, %v432
    %v434 = vrcp.pop %v404
    %v435 = vmul.f32 1.0, %v434
    %v436 = vrcp.pop %v405
    %v437 = vmul.f32 1.0, %v436
    %v438 = vmul.f32 %v407, 1.2
    %v439 = vmul.f32 %v409, 1.2
    %v440 = vmul.f32 %v411, 1.2
    %v441 = vmul.f32 %v413, 1.2
    %v442 = vmul.f32 %v415, 1.2
    %v443 = vmul.f32 %v417, 1.2
    %v444 = vmul.f32 %v419, 1.2
    %v445 = vmul.f32 %v421, 1.2
    %v446 = vmul.f32 %v423, 1.2
    %v447 = vmul.f32 %v425, 1.2
    %v448 = vmul.f32 %v427, 1.2
    %v449 = vmul.f32 %v429, 1.2
    %v450 = vmul.f32 %v431, 1.2
    %v451 = vmul.f32 %v433, 1.2
    %v452 = vmul.f32 %v435, 1.2
    %v453 = vmul.f32 %v437, 1.2
    %v454 = vadd.f32 %v438, -0.1
    %v455 = vadd.f32 %v439, -0.1
    %v456 = vadd.f32 %v440, -0.1
    %v457 = vadd.f32 %v441, -0.1
    %v458 = vadd.f32 %v442, -0.1
    %v459 = vadd.f32 %v443, -0.1
    %v460 = vadd.f32 %v444, -0.1
    %v461 = vadd.f32 %v445, -0.1
    %v462 = vadd.f32 %v446, -0.1
    %v463 = vadd.f32 %v447, -0.1
    %v464 = vadd.f32 %v448, -0.1
    %v465 = vadd.f32 %v449, -0.1
    %v466 = vadd.f32 %v450, -0.1
    %v467 = vadd.f32 %v451, -0.1
    %v468 = vadd.f32 %v452, -0.1
    %v469 = vadd.f32 %v453, -0.1
    %v470 = vmax.f32 %v454, 0.0
    %v471 = vmax.f32 %v455, 0.0
    %v472 = vmax.f32 %v456, 0.0
    %v473 = vmax.f32 %v457, 0.0
    %v474 = vmax.f32 %v458, 0.0
    %v475 = vmax.f32 %v459, 0.0
    %v476 = vmax.f32 %v460, 0.0
    %v477 = vmax.f32 %v461, 0.0
    %v478 = vmax.f32 %v462, 0.0
    %v479 = vmax.f32 %v463, 0.0
    %v480 = vmax.f32 %v464, 0.0
    %v481 = vmax.f32 %v465, 0.0
    %v482 = vmax.f32 %v466, 0.0
    %v483 = vmax.f32 %v467, 0.0
    %v484 = vmax.f32 %v468, 0.0
    %v485 = vmax.f32 %v469, 0.0
    %v486 = vmin.f32 %v470, 1.0
    %v487 = vmin.f32 %v471, 1.0
    %v488 = vmin.f32 %v472, 1.0
    %v489 = vmin.f32 %v473, 1.0
    %v490 = vmin.f32 %v474, 1.0
    %v491 = vmin.f32 %v475, 1.0
    %v492 = vmin.f32 %v476, 1.0
    %v493 = vmin.f32 %v477, 1.0
    %v494 = vmin.f32 %v478, 1.0
    %v495 = vmin.f32 %v479, 1.0
    %v496 = vmin.f32 %v480, 1.0
    %v497 = vmin.f32 %v481, 1.0
    %v498 = vmin.f32 %v482, 1.0
    %v499 = vmin.f32 %v483, 1.0
    %v500 = vmin.f32 %v484, 1.0
    %v501 = vmin.f32 %v485, 1.0
    %v502 = vmul.f32 %v310, %v486
    %v503 = vmul.f32 %v311, %v487
    %v504 = vmul.f32 %v312, %v488
    %v505 = vmul.f32 %v313, %v489
    %v506 = vmul.f32 %v314, %v490
    %v507 = vmul.f32 %v315, %v491
    %v508 = vmul.f32 %v316, %v492
    %v509 = vmul.f32 %v317, %v493
    %v510 = vmul.f32 %v318, %v494
    %v511 = vmul.f32 %v319, %v495
    %v512 = vmul.f32 %v320, %v496
    %v513 = vmul.f32 %v321, %v497
    %v514 = vmul.f32 %v322, %v498
    %v515 = vmul.f32 %v323, %v499
    %v516 = vmul.f32 %v324, %v500
    %v517 = vmul.f32 %v325, %v501
    %518 = vmatprep.subr.mxu0 0.0
    %519 = vmatpush1.msra.mxu0 %v502
    %520 = vmatprep.subr.mxu0 0.0
    %521 = vmatpush1.msra.mxu0 %v503
    %522 = vmatprep.subr.mxu0 0.0
    %523 = vmatpush1.msra.mxu0 %v504
    %524 = vmatprep.subr.mxu0 0.0
    %525 = vmatpush1.msra.mxu0 %v505
    %526 = vmatprep.subr.mxu0 0.0
    %527 = vmatpush1.msra.mxu0 %v506
    %528 = vmatprep.subr.mxu0 0.0
    %529 = vmatpush1.msra.mxu0 %v507
    %530 = vmatprep.subr.mxu0 0.0
    %531 = vmatpush1.msra.mxu0 %v508
    %532 = vmatprep.subr.mxu0 0.0
    %533 = vmatpush1.msra.mxu0 %v509
    %534 = vmatprep.subr.mxu0 0.0
    %535 = vmatpush1.msra.mxu0 %v510
    %536 = vmatprep.subr.mxu0 0.0
    %537 = vmatpush1.msra.mxu0 %v511
    %538 = vmatprep.subr.mxu0 0.0
    %539 = vmatpush1.msra.mxu0 %v512
    %540 = vmatprep.subr.mxu0 0.0
    %541 = vmatpush1.msra.mxu0 %v513
    %542 = vmatprep.subr.mxu0 0.0
    %543 = vmatpush1.msra.mxu0 %v514
    %544 = vmatprep.subr.mxu0 0.0
    %545 = vmatpush1.msra.mxu0 %v515
    %546 = vmatprep.subr.mxu0 0.0
    %547 = vmatpush1.msra.mxu0 %v516
    %548 = vmatprep.subr.mxu0 0.0
    %549 = vmatpush1.msra.mxu0 %v517
    %550 = vmatprep.subr.mxu0 0.0
    %551 = vmatpush1.msra.mxu0 0.0
    %552 = vmatprep.subr.mxu0 0.0
    %553 = vmatpush1.msra.mxu0 0.0
    %554 = vmatprep.subr.mxu0 0.0
    %555 = vmatpush1.msra.mxu0 0.0
    %556 = vmatprep.subr.mxu0 0.0
    %557 = vmatpush1.msra.mxu0 0.0
    %558 = vmatprep.subr.mxu0 0.0
    %559 = vmatpush1.msra.mxu0 0.0
    %560 = vmatprep.subr.mxu0 0.0
    %561 = vmatpush1.msra.mxu0 0.0
    %562 = vmatprep.subr.mxu0 0.0
    %563 = vmatpush1.msra.mxu0 0.0
    %564 = vmatprep.subr.mxu0 0.0
    %565 = vmatpush1.msra.mxu0 0.0
    %566 = vmatprep.subr.mxu0 0.0
    %567 = vmatpush1.msra.mxu0 0.0
    %568 = vmatprep.subr.mxu0 0.0
    %569 = vmatpush1.msra.mxu0 0.0
    %570 = vmatprep.subr.mxu0 0.0
    %571 = vmatpush1.msra.mxu0 0.0
    %572 = vmatprep.subr.mxu0 0.0
    %573 = vmatpush1.msra.mxu0 0.0
    %574 = vmatprep.subr.mxu0 0.0
    %575 = vmatpush1.msra.mxu0 0.0
    %576 = vmatprep.subr.mxu0 0.0
    %577 = vmatpush1.msra.mxu0 0.0
    %578 = vmatprep.subr.mxu0 0.0
    %579 = vmatpush1.msra.mxu0 0.0
    %580 = vmatprep.subr.mxu0 0.0
    %581 = vmatpush1.msra.mxu0 0.0
    %582 = vmatprep.mubr.f32.mxu0 0.0
    %583 = vmatmul.mubr.f32.gmra.mrb[0].mxu0 %v309
    %v584 = vpop.f32.mrb[0].mxu0
    %v585 = vadd.f32 %v225, %v584
    %v586 = vpop.f32.mrb[0].mxu0
    %587 = vdwg.mxu0
    %s588 = sld [smem:[#allocation2 + $0x1]]
    %v589 = vstv %s588
    %v590 = vadd.f32 %v585, %v589
    %v591 = vmax.f32 %v590, 0.0
    %v592 = vand.u32 2147483647, %v590
    %v593 = vsub.f32 0.0, %v592
    %v594 = vmul.f32 %v593, 1.442695
    %v595 = vpow.pop %v594
    %v596 = vadd.f32 %v595, 1.0
    %v597 = vlog2.pop %v596
    %v598 = vmul.f32 %v597, 0.6931472
    %v599 = vadd.f32 %v591, %v598
    %s600 = sld [smem:[#allocation7 + $0x1]]
    %v601 = vstv %s600
    %v602 = vmul.f32 %v601, %v599
    %s603 = scalar_lea.vmem [#allocation8], 128
    %v604 = vld [vmem:[%s603] sm:$0xff]
    %v605 = vld [vmem:[%s603 + $0x8] sm:$0xff]
    %v606 = vld [vmem:[%s603 + $0x10] sm:$0xff]
    %v607 = vld [vmem:[%s603 + $0x18] sm:$0xff]
    %v608 = vld [vmem:[%s603 + $0x20] sm:$0xff]
    %v609 = vld [vmem:[%s603 + $0x28] sm:$0xff]
    %v610 = vld [vmem:[%s603 + $0x30] sm:$0xff]
    %v611 = vld [vmem:[%s603 + $0x38] sm:$0xff]
    %v612 = vld [vmem:[%s603 + $0x40] sm:$0xff]
    %v613 = vld [vmem:[%s603 + $0x48] sm:$0xff]
    %v614 = vld [vmem:[%s603 + $0x50] sm:$0xff]
    %v615 = vld [vmem:[%s603 + $0x58] sm:$0xff]
    %v616 = vld [vmem:[%s603 + $0x60] sm:$0xff]
    %v617 = vld [vmem:[%s603 + $0x68] sm:$0xff]
    %v618 = vld [vmem:[%s603 + $0x70] sm:$0xff]
    %v619 = vld [vmem:[%s603 + $0x78] sm:$0xff]
    %s620 = scalar_lea.vmem [#allocation9], 128
    %v621 = vld [vmem:[%s620] sm:$0xff]
    %v622 = vld [vmem:[%s620 + $0x8] sm:$0xff]
    %v623 = vld [vmem:[%s620 + $0x10] sm:$0xff]
    %v624 = vld [vmem:[%s620 + $0x18] sm:$0xff]
    %v625 = vld [vmem:[%s620 + $0x20] sm:$0xff]
    %v626 = vld [vmem:[%s620 + $0x28] sm:$0xff]
    %v627 = vld [vmem:[%s620 + $0x30] sm:$0xff]
    %v628 = vld [vmem:[%s620 + $0x38] sm:$0xff]
    %v629 = vld [vmem:[%s620 + $0x40] sm:$0xff]
    %v630 = vld [vmem:[%s620 + $0x48] sm:$0xff]
    %v631 = vld [vmem:[%s620 + $0x50] sm:$0xff]
    %v632 = vld [vmem:[%s620 + $0x58] sm:$0xff]
    %v633 = vld [vmem:[%s620 + $0x60] sm:$0xff]
    %v634 = vld [vmem:[%s620 + $0x68] sm:$0xff]
    %v635 = vld [vmem:[%s620 + $0x70] sm:$0xff]
    %v636 = vld [vmem:[%s620 + $0x78] sm:$0xff]
    %v637 = vsub.f32 0.0, %v621
    %v638 = vsub.f32 0.0, %v622
    %v639 = vsub.f32 0.0, %v623
    %v640 = vsub.f32 0.0, %v624
    %v641 = vsub.f32 0.0, %v625
    %v642 = vsub.f32 0.0, %v626
    %v643 = vsub.f32 0.0, %v627
    %v644 = vsub.f32 0.0, %v628
    %v645 = vsub.f32 0.0, %v629
    %v646 = vsub.f32 0.0, %v630
    %v647 = vsub.f32 0.0, %v631
    %v648 = vsub.f32 0.0, %v632
    %v649 = vsub.f32 0.0, %v633
    %v650 = vsub.f32 0.0, %v634
    %v651 = vsub.f32 0.0, %v635
    %v652 = vsub.f32 0.0, %v636
    %v653 = vmul.f32 %v637, 1.442695
    %v654 = vpow.pop %v653
    %v655 = vmul.f32 %v638, 1.442695
    %v656 = vpow.pop %v655
    %v657 = vmul.f32 %v639, 1.442695
    %v658 = vpow.pop %v657
    %v659 = vmul.f32 %v640, 1.442695
    %v660 = vpow.pop %v659
    %v661 = vmul.f32 %v641, 1.442695
    %v662 = vpow.pop %v661
    %v663 = vmul.f32 %v642, 1.442695
    %v664 = vpow.pop %v663
    %v665 = vmul.f32 %v643, 1.442695
    %v666 = vpow.pop %v665
    %v667 = vmul.f32 %v644, 1.442695
    %v668 = vpow.pop %v667
    %v669 = vmul.f32 %v645, 1.442695
    %v670 = vpow.pop %v669
    %v671 = vmul.f32 %v646, 1.442695
    %v672 = vpow.pop %v671
    %v673 = vmul.f32 %v647, 1.442695
    %v674 = vpow.pop %v673
    %v675 = vmul.f32 %v648, 1.442695
    %v676 = vpow.pop %v675
    %v677 = vmul.f32 %v649, 1.442695
    %v678 = vpow.pop %v677
    %v679 = vmul.f32 %v650, 1.442695
    %v680 = vpow.pop %v679
    %v681 = vmul.f32 %v651, 1.442695
    %v682 = vpow.pop %v681
    %v683 = vmul.f32 %v652, 1.442695
    %v684 = vpow.pop %v683
    %v685 = vadd.f32 %v654, 1.0
    %v686 = vadd.f32 %v656, 1.0
    %v687 = vadd.f32 %v658, 1.0
    %v688 = vadd.f32 %v660, 1.0
    %v689 = vadd.f32 %v662, 1.0
    %v690 = vadd.f32 %v664, 1.0
    %v691 = vadd.f32 %v666, 1.0
    %v692 = vadd.f32 %v668, 1.0
    %v693 = vadd.f32 %v670, 1.0
    %v694 = vadd.f32 %v672, 1.0
    %v695 = vadd.f32 %v674, 1.0
    %v696 = vadd.f32 %v676, 1.0
    %v697 = vadd.f32 %v678, 1.0
    %v698 = vadd.f32 %v680, 1.0
    %v699 = vadd.f32 %v682, 1.0
    %v700 = vadd.f32 %v684, 1.0
    %v701 = vrcp.pop %v685
    %v702 = vmul.f32 1.0, %v701
    %v703 = vrcp.pop %v686
    %v704 = vmul.f32 1.0, %v703
    %v705 = vrcp.pop %v687
    %v706 = vmul.f32 1.0, %v705
    %v707 = vrcp.pop %v688
    %v708 = vmul.f32 1.0, %v707
    %v709 = vrcp.pop %v689
    %v710 = vmul.f32 1.0, %v709
    %v711 = vrcp.pop %v690
    %v712 = vmul.f32 1.0, %v711
    %v713 = vrcp.pop %v691
    %v714 = vmul.f32 1.0, %v713
    %v715 = vrcp.pop %v692
    %v716 = vmul.f32 1.0, %v715
    %v717 = vrcp.pop %v693
    %v718 = vmul.f32 1.0, %v717
    %v719 = vrcp.pop %v694
    %v720 = vmul.f32 1.0, %v719
    %v721 = vrcp.pop %v695
    %v722 = vmul.f32 1.0, %v721
    %v723 = vrcp.pop %v696
    %v724 = vmul.f32 1.0, %v723
    %v725 = vrcp.pop %v697
    %v726 = vmul.f32 1.0, %v725
    %v727 = vrcp.pop %v698
    %v728 = vmul.f32 1.0, %v727
    %v729 = vrcp.pop %v699
    %v730 = vmul.f32 1.0, %v729
    %v731 = vrcp.pop %v700
    %v732 = vmul.f32 1.0, %v731
    %v733 = vmul.f32 %v702, 1.2
    %v734 = vmul.f32 %v704, 1.2
    %v735 = vmul.f32 %v706, 1.2
    %v736 = vmul.f32 %v708, 1.2
    %v737 = vmul.f32 %v710, 1.2
    %v738 = vmul.f32 %v712, 1.2
    %v739 = vmul.f32 %v714, 1.2
    %v740 = vmul.f32 %v716, 1.2
    %v741 = vmul.f32 %v718, 1.2
    %v742 = vmul.f32 %v720, 1.2
    %v743 = vmul.f32 %v722, 1.2
    %v744 = vmul.f32 %v724, 1.2
    %v745 = vmul.f32 %v726, 1.2
    %v746 = vmul.f32 %v728, 1.2
    %v747 = vmul.f32 %v730, 1.2
    %v748 = vmul.f32 %v732, 1.2
    %v749 = vadd.f32 %v733, -0.1
    %v750 = vadd.f32 %v734, -0.1
    %v751 = vadd.f32 %v735, -0.1
    %v752 = vadd.f32 %v736, -0.1
    %v753 = vadd.f32 %v737, -0.1
    %v754 = vadd.f32 %v738, -0.1
    %v755 = vadd.f32 %v739, -0.1
    %v756 = vadd.f32 %v740, -0.1
    %v757 = vadd.f32 %v741, -0.1
    %v758 = vadd.f32 %v742, -0.1
    %v759 = vadd.f32 %v743, -0.1
    %v760 = vadd.f32 %v744, -0.1
    %v761 = vadd.f32 %v745, -0.1
    %v762 = vadd.f32 %v746, -0.1
    %v763 = vadd.f32 %v747, -0.1
    %v764 = vadd.f32 %v748, -0.1
    %v765 = vmax.f32 %v749, 0.0
    %v766 = vmax.f32 %v750, 0.0
    %v767 = vmax.f32 %v751, 0.0
    %v768 = vmax.f32 %v752, 0.0
    %v769 = vmax.f32 %v753, 0.0
    %v770 = vmax.f32 %v754, 0.0
    %v771 = vmax.f32 %v755, 0.0
    %v772 = vmax.f32 %v756, 0.0
    %v773 = vmax.f32 %v757, 0.0
    %v774 = vmax.f32 %v758, 0.0
    %v775 = vmax.f32 %v759, 0.0
    %v776 = vmax.f32 %v760, 0.0
    %v777 = vmax.f32 %v761, 0.0
    %v778 = vmax.f32 %v762, 0.0
    %v779 = vmax.f32 %v763, 0.0
    %v780 = vmax.f32 %v764, 0.0
    %v781 = vmin.f32 %v765, 1.0
    %v782 = vmin.f32 %v766, 1.0
    %v783 = vmin.f32 %v767, 1.0
    %v784 = vmin.f32 %v768, 1.0
    %v785 = vmin.f32 %v769, 1.0
    %v786 = vmin.f32 %v770, 1.0
    %v787 = vmin.f32 %v771, 1.0
    %v788 = vmin.f32 %v772, 1.0
    %v789 = vmin.f32 %v773, 1.0
    %v790 = vmin.f32 %v774, 1.0
    %v791 = vmin.f32 %v775, 1.0
    %v792 = vmin.f32 %v776, 1.0
    %v793 = vmin.f32 %v777, 1.0
    %v794 = vmin.f32 %v778, 1.0
    %v795 = vmin.f32 %v779, 1.0
    %v796 = vmin.f32 %v780, 1.0
    %v797 = vmul.f32 %v604, %v781
    %v798 = vmul.f32 %v605, %v782
    %v799 = vmul.f32 %v606, %v783
    %v800 = vmul.f32 %v607, %v784
    %v801 = vmul.f32 %v608, %v785
    %v802 = vmul.f32 %v609, %v786
    %v803 = vmul.f32 %v610, %v787
    %v804 = vmul.f32 %v611, %v788
    %v805 = vmul.f32 %v612, %v789
    %v806 = vmul.f32 %v613, %v790
    %v807 = vmul.f32 %v614, %v791
    %v808 = vmul.f32 %v615, %v792
    %v809 = vmul.f32 %v616, %v793
    %v810 = vmul.f32 %v617, %v794
    %v811 = vmul.f32 %v618, %v795
    %v812 = vmul.f32 %v619, %v796
    %813 = vmatprep.subr.mxu0 0.0
    %814 = vmatpush1.msra.mxu0 %v797
    %815 = vmatprep.subr.mxu0 0.0
    %816 = vmatpush1.msra.mxu0 %v798
    %817 = vmatprep.subr.mxu0 0.0
    %818 = vmatpush1.msra.mxu0 %v799
    %819 = vmatprep.subr.mxu0 0.0
    %820 = vmatpush1.msra.mxu0 %v800
    %821 = vmatprep.subr.mxu0 0.0
    %822 = vmatpush1.msra.mxu0 %v801
    %823 = vmatprep.subr.mxu0 0.0
    %824 = vmatpush1.msra.mxu0 %v802
    %825 = vmatprep.subr.mxu0 0.0
    %826 = vmatpush1.msra.mxu0 %v803
    %827 = vmatprep.subr.mxu0 0.0
    %828 = vmatpush1.msra.mxu0 %v804
    %829 = vmatprep.subr.mxu0 0.0
    %830 = vmatpush1.msra.mxu0 %v805
    %831 = vmatprep.subr.mxu0 0.0
    %832 = vmatpush1.msra.mxu0 %v806
    %833 = vmatprep.subr.mxu0 0.0
    %834 = vmatpush1.msra.mxu0 %v807
    %835 = vmatprep.subr.mxu0 0.0
    %836 = vmatpush1.msra.mxu0 %v808
    %837 = vmatprep.subr.mxu0 0.0
    %838 = vmatpush1.msra.mxu0 %v809
    %839 = vmatprep.subr.mxu0 0.0
    %840 = vmatpush1.msra.mxu0 %v810
    %841 = vmatprep.subr.mxu0 0.0
    %842 = vmatpush1.msra.mxu0 %v811
    %843 = vmatprep.subr.mxu0 0.0
    %844 = vmatpush1.msra.mxu0 %v812
    %845 = vmatprep.subr.mxu0 0.0
    %846 = vmatpush1.msra.mxu0 0.0
    %847 = vmatprep.subr.mxu0 0.0
    %848 = vmatpush1.msra.mxu0 0.0
    %849 = vmatprep.subr.mxu0 0.0
    %850 = vmatpush1.msra.mxu0 0.0
    %851 = vmatprep.subr.mxu0 0.0
    %852 = vmatpush1.msra.mxu0 0.0
    %853 = vmatprep.subr.mxu0 0.0
    %854 = vmatpush1.msra.mxu0 0.0
    %855 = vmatprep.subr.mxu0 0.0
    %856 = vmatpush1.msra.mxu0 0.0
    %857 = vmatprep.subr.mxu0 0.0
    %858 = vmatpush1.msra.mxu0 0.0
    %859 = vmatprep.subr.mxu0 0.0
    %860 = vmatpush1.msra.mxu0 0.0
    %861 = vmatprep.subr.mxu0 0.0
    %862 = vmatpush1.msra.mxu0 0.0
    %863 = vmatprep.subr.mxu0 0.0
    %864 = vmatpush1.msra.mxu0 0.0
    %865 = vmatprep.subr.mxu0 0.0
    %866 = vmatpush1.msra.mxu0 0.0
    %867 = vmatprep.subr.mxu0 0.0
    %868 = vmatpush1.msra.mxu0 0.0
    %869 = vmatprep.subr.mxu0 0.0
    %870 = vmatpush1.msra.mxu0 0.0
    %871 = vmatprep.subr.mxu0 0.0
    %872 = vmatpush1.msra.mxu0 0.0
    %873 = vmatprep.subr.mxu0 0.0
    %874 = vmatpush1.msra.mxu0 0.0
    %875 = vmatprep.subr.mxu0 0.0
    %876 = vmatpush1.msra.mxu0 0.0
    %877 = vmatprep.mubr.f32.mxu0 0.0
    %878 = vmatmul.mubr.f32.gmra.mrb[0].mxu0 %v602
    %v879 = vpop.f32.mrb[0].mxu0
    %v880 = vadd.f32 %v294, %v879
    %v881 = vpop.f32.mrb[0].mxu0
    %882 = vdwg.mxu0
    %s883 = sld [smem:[#allocation2 + $0x2]]
    %v884 = vstv %s883
    %v885 = vadd.f32 %v880, %v884
    %v886 = vmax.f32 %v885, 0.0
    %v887 = vand.u32 2147483647, %v885
    %v888 = vsub.f32 0.0, %v887
    %v889 = vmul.f32 %v888, 1.442695
    %v890 = vpow.pop %v889
    %v891 = vadd.f32 %v890, 1.0
    %v892 = vlog2.pop %v891
    %v893 = vmul.f32 %v892, 0.6931472
    %v894 = vadd.f32 %v886, %v893
    %s895 = sld [smem:[#allocation7 + $0x2]]
    %v896 = vstv %s895
    %v897 = vmul.f32 %v896, %v894
    %v898 = vld [vmem:[#allocation11] sm:$0xff]
    %v899 = vld [vmem:[#allocation11 + $0x8] sm:$0xff]
    %v900 = vld [vmem:[#allocation11 + $0x10] sm:$0xff]
    %v901 = vld [vmem:[#allocation11 + $0x18] sm:$0xff]
    %v902 = vld [vmem:[#allocation11 + $0x20] sm:$0xff]
    %v903 = vld [vmem:[#allocation11 + $0x28] sm:$0xff]
    %v904 = vld [vmem:[#allocation11 + $0x30] sm:$0xff]
    %v905 = vld [vmem:[#allocation11 + $0x38] sm:$0xff]
    %v906 = vld [vmem:[#allocation11 + $0x40] sm:$0xff]
    %v907 = vld [vmem:[#allocation11 + $0x48] sm:$0xff]
    %v908 = vld [vmem:[#allocation11 + $0x50] sm:$0xff]
    %v909 = vld [vmem:[#allocation11 + $0x58] sm:$0xff]
    %v910 = vld [vmem:[#allocation11 + $0x60] sm:$0xff]
    %v911 = vld [vmem:[#allocation11 + $0x68] sm:$0xff]
    %v912 = vld [vmem:[#allocation11 + $0x70] sm:$0xff]
    %v913 = vld [vmem:[#allocation11 + $0x78] sm:$0xff]
    %v914 = vld [vmem:[#allocation12] sm:$0xff]
    %v915 = vld [vmem:[#allocation12 + $0x8] sm:$0xff]
    %v916 = vld [vmem:[#allocation12 + $0x10] sm:$0xff]
    %v917 = vld [vmem:[#allocation12 + $0x18] sm:$0xff]
    %v918 = vld [vmem:[#allocation12 + $0x20] sm:$0xff]
    %v919 = vld [vmem:[#allocation12 + $0x28] sm:$0xff]
    %v920 = vld [vmem:[#allocation12 + $0x30] sm:$0xff]
    %v921 = vld [vmem:[#allocation12 + $0x38] sm:$0xff]
    %v922 = vld [vmem:[#allocation12 + $0x40] sm:$0xff]
    %v923 = vld [vmem:[#allocation12 + $0x48] sm:$0xff]
    %v924 = vld [vmem:[#allocation12 + $0x50] sm:$0xff]
    %v925 = vld [vmem:[#allocation12 + $0x58] sm:$0xff]
    %v926 = vld [vmem:[#allocation12 + $0x60] sm:$0xff]
    %v927 = vld [vmem:[#allocation12 + $0x68] sm:$0xff]
    %v928 = vld [vmem:[#allocation12 + $0x70] sm:$0xff]
    %v929 = vld [vmem:[#allocation12 + $0x78] sm:$0xff]
    %v930 = vsub.f32 0.0, %v914
    %v931 = vsub.f32 0.0, %v915
    %v932 = vsub.f32 0.0, %v916
    %v933 = vsub.f32 0.0, %v917
    %v934 = vsub.f32 0.0, %v918
    %v935 = vsub.f32 0.0, %v919
    %v936 = vsub.f32 0.0, %v920
    %v937 = vsub.f32 0.0, %v921
    %v938 = vsub.f32 0.0, %v922
    %v939 = vsub.f32 0.0, %v923
    %v940 = vsub.f32 0.0, %v924
    %v941 = vsub.f32 0.0, %v925
    %v942 = vsub.f32 0.0, %v926
    %v943 = vsub.f32 0.0, %v927
    %v944 = vsub.f32 0.0, %v928
    %v945 = vsub.f32 0.0, %v929
    %v946 = vmul.f32 %v930, 1.442695
    %v947 = vpow.pop %v946
    %v948 = vmul.f32 %v931, 1.442695
    %v949 = vpow.pop %v948
    %v950 = vmul.f32 %v932, 1.442695
    %v951 = vpow.pop %v950
    %v952 = vmul.f32 %v933, 1.442695
    %v953 = vpow.pop %v952
    %v954 = vmul.f32 %v934, 1.442695
    %v955 = vpow.pop %v954
    %v956 = vmul.f32 %v935, 1.442695
    %v957 = vpow.pop %v956
    %v958 = vmul.f32 %v936, 1.442695
    %v959 = vpow.pop %v958
    %v960 = vmul.f32 %v937, 1.442695
    %v961 = vpow.pop %v960
    %v962 = vmul.f32 %v938, 1.442695
    %v963 = vpow.pop %v962
    %v964 = vmul.f32 %v939, 1.442695
    %v965 = vpow.pop %v964
    %v966 = vmul.f32 %v940, 1.442695
    %v967 = vpow.pop %v966
    %v968 = vmul.f32 %v941, 1.442695
    %v969 = vpow.pop %v968
    %v970 = vmul.f32 %v942, 1.442695
    %v971 = vpow.pop %v970
    %v972 = vmul.f32 %v943, 1.442695
    %v973 = vpow.pop %v972
    %v974 = vmul.f32 %v944, 1.442695
    %v975 = vpow.pop %v974
    %v976 = vmul.f32 %v945, 1.442695
    %v977 = vpow.pop %v976
    %v978 = vadd.f32 %v947, 1.0
    %v979 = vadd.f32 %v949, 1.0
    %v980 = vadd.f32 %v951, 1.0
    %v981 = vadd.f32 %v953, 1.0
    %v982 = vadd.f32 %v955, 1.0
    %v983 = vadd.f32 %v957, 1.0
    %v984 = vadd.f32 %v959, 1.0
    %v985 = vadd.f32 %v961, 1.0
    %v986 = vadd.f32 %v963, 1.0
    %v987 = vadd.f32 %v965, 1.0
    %v988 = vadd.f32 %v967, 1.0
    %v989 = vadd.f32 %v969, 1.0
    %v990 = vadd.f32 %v971, 1.0
    %v991 = vadd.f32 %v973, 1.0
    %v992 = vadd.f32 %v975, 1.0
    %v993 = vadd.f32 %v977, 1.0
    %v994 = vrcp.pop %v978
    %v995 = vmul.f32 1.0, %v994
    %v996 = vrcp.pop %v979
    %v997 = vmul.f32 1.0, %v996
    %v998 = vrcp.pop %v980
    %v999 = vmul.f32 1.0, %v998
    %v1000 = vrcp.pop %v981
    %v1001 = vmul.f32 1.0, %v1000
    %v1002 = vrcp.pop %v982
    %v1003 = vmul.f32 1.0, %v1002
    %v1004 = vrcp.pop %v983
    %v1005 = vmul.f32 1.0, %v1004
    %v1006 = vrcp.pop %v984
    %v1007 = vmul.f32 1.0, %v1006
    %v1008 = vrcp.pop %v985
    %v1009 = vmul.f32 1.0, %v1008
    %v1010 = vrcp.pop %v986
    %v1011 = vmul.f32 1.0, %v1010
    %v1012 = vrcp.pop %v987
    %v1013 = vmul.f32 1.0, %v1012
    %v1014 = vrcp.pop %v988
    %v1015 = vmul.f32 1.0, %v1014
    %v1016 = vrcp.pop %v989
    %v1017 = vmul.f32 1.0, %v1016
    %v1018 = vrcp.pop %v990
    %v1019 = vmul.f32 1.0, %v1018
    %v1020 = vrcp.pop %v991
    %v1021 = vmul.f32 1.0, %v1020
    %v1022 = vrcp.pop %v992
    %v1023 = vmul.f32 1.0, %v1022
    %v1024 = vrcp.pop %v993
    %v1025 = vmul.f32 1.0, %v1024
    %v1026 = vmul.f32 %v995, 1.2
    %v1027 = vmul.f32 %v997, 1.2
    %v1028 = vmul.f32 %v999, 1.2
    %v1029 = vmul.f32 %v1001, 1.2
    %v1030 = vmul.f32 %v1003, 1.2
    %v1031 = vmul.f32 %v1005, 1.2
    %v1032 = vmul.f32 %v1007, 1.2
    %v1033 = vmul.f32 %v1009, 1.2
    %v1034 = vmul.f32 %v1011, 1.2
    %v1035 = vmul.f32 %v1013, 1.2
    %v1036 = vmul.f32 %v1015, 1.2
    %v1037 = vmul.f32 %v1017, 1.2
    %v1038 = vmul.f32 %v1019, 1.2
    %v1039 = vmul.f32 %v1021, 1.2
    %v1040 = vmul.f32 %v1023, 1.2
    %v1041 = vmul.f32 %v1025, 1.2
    %v1042 = vadd.f32 %v1026, -0.1
    %v1043 = vadd.f32 %v1027, -0.1
    %v1044 = vadd.f32 %v1028, -0.1
    %v1045 = vadd.f32 %v1029, -0.1
    %v1046 = vadd.f32 %v1030, -0.1
    %v1047 = vadd.f32 %v1031, -0.1
    %v1048 = vadd.f32 %v1032, -0.1
    %v1049 = vadd.f32 %v1033, -0.1
    %v1050 = vadd.f32 %v1034, -0.1
    %v1051 = vadd.f32 %v1035, -0.1
    %v1052 = vadd.f32 %v1036, -0.1
    %v1053 = vadd.f32 %v1037, -0.1
    %v1054 = vadd.f32 %v1038, -0.1
    %v1055 = vadd.f32 %v1039, -0.1
    %v1056 = vadd.f32 %v1040, -0.1
    %v1057 = vadd.f32 %v1041, -0.1
    %v1058 = vmax.f32 %v1042, 0.0
    %v1059 = vmax.f32 %v1043, 0.0
    %v1060 = vmax.f32 %v1044, 0.0
    %v1061 = vmax.f32 %v1045, 0.0
    %v1062 = vmax.f32 %v1046, 0.0
    %v1063 = vmax.f32 %v1047, 0.0
    %v1064 = vmax.f32 %v1048, 0.0
    %v1065 = vmax.f32 %v1049, 0.0
    %v1066 = vmax.f32 %v1050, 0.0
    %v1067 = vmax.f32 %v1051, 0.0
    %v1068 = vmax.f32 %v1052, 0.0
    %v1069 = vmax.f32 %v1053, 0.0
    %v1070 = vmax.f32 %v1054, 0.0
    %v1071 = vmax.f32 %v1055, 0.0
    %v1072 = vmax.f32 %v1056, 0.0
    %v1073 = vmax.f32 %v1057, 0.0
    %v1074 = vmin.f32 %v1058, 1.0
    %v1075 = vmin.f32 %v1059, 1.0
    %v1076 = vmin.f32 %v1060, 1.0
    %v1077 = vmin.f32 %v1061, 1.0
    %v1078 = vmin.f32 %v1062, 1.0
    %v1079 = vmin.f32 %v1063, 1.0
    %v1080 = vmin.f32 %v1064, 1.0
    %v1081 = vmin.f32 %v1065, 1.0
    %v1082 = vmin.f32 %v1066, 1.0
    %v1083 = vmin.f32 %v1067, 1.0
    %v1084 = vmin.f32 %v1068, 1.0
    %v1085 = vmin.f32 %v1069, 1.0
    %v1086 = vmin.f32 %v1070, 1.0
    %v1087 = vmin.f32 %v1071, 1.0
    %v1088 = vmin.f32 %v1072, 1.0
    %v1089 = vmin.f32 %v1073, 1.0
    %v1090 = vmul.f32 %v898, %v1074
    %v1091 = vmul.f32 %v899, %v1075
    %v1092 = vmul.f32 %v900, %v1076
    %v1093 = vmul.f32 %v901, %v1077
    %v1094 = vmul.f32 %v902, %v1078
    %v1095 = vmul.f32 %v903, %v1079
    %v1096 = vmul.f32 %v904, %v1080
    %v1097 = vmul.f32 %v905, %v1081
    %v1098 = vmul.f32 %v906, %v1082
    %v1099 = vmul.f32 %v907, %v1083
    %v1100 = vmul.f32 %v908, %v1084
    %v1101 = vmul.f32 %v909, %v1085
    %v1102 = vmul.f32 %v910, %v1086
    %v1103 = vmul.f32 %v911, %v1087
    %v1104 = vmul.f32 %v912, %v1088
    %v1105 = vmul.f32 %v913, %v1089
    %1106 = vmatprep.subr.mxu0 0.0
    %1107 = vmatpush1.msra.mxu0 %v1090
    %1108 = vmatprep.subr.mxu0 0.0
    %1109 = vmatpush1.msra.mxu0 %v1091
    %1110 = vmatprep.subr.mxu0 0.0
    %1111 = vmatpush1.msra.mxu0 %v1092
    %1112 = vmatprep.subr.mxu0 0.0
    %1113 = vmatpush1.msra.mxu0 %v1093
    %1114 = vmatprep.subr.mxu0 0.0
    %1115 = vmatpush1.msra.mxu0 %v1094
    %1116 = vmatprep.subr.mxu0 0.0
    %1117 = vmatpush1.msra.mxu0 %v1095
    %1118 = vmatprep.subr.mxu0 0.0
    %1119 = vmatpush1.msra.mxu0 %v1096
    %1120 = vmatprep.subr.mxu0 0.0
    %1121 = vmatpush1.msra.mxu0 %v1097
    %1122 = vmatprep.subr.mxu0 0.0
    %1123 = vmatpush1.msra.mxu0 %v1098
    %1124 = vmatprep.subr.mxu0 0.0
    %1125 = vmatpush1.msra.mxu0 %v1099
    %1126 = vmatprep.subr.mxu0 0.0
    %1127 = vmatpush1.msra.mxu0 %v1100
    %1128 = vmatprep.subr.mxu0 0.0
    %1129 = vmatpush1.msra.mxu0 %v1101
    %1130 = vmatprep.subr.mxu0 0.0
    %1131 = vmatpush1.msra.mxu0 %v1102
    %1132 = vmatprep.subr.mxu0 0.0
    %1133 = vmatpush1.msra.mxu0 %v1103
    %1134 = vmatprep.subr.mxu0 0.0
    %1135 = vmatpush1.msra.mxu0 %v1104
    %1136 = vmatprep.subr.mxu0 0.0
    %1137 = vmatpush1.msra.mxu0 %v1105
    %1138 = vmatprep.subr.mxu0 0.0
    %1139 = vmatpush1.msra.mxu0 0.0
    %1140 = vmatprep.subr.mxu0 0.0
    %1141 = vmatpush1.msra.mxu0 0.0
    %1142 = vmatprep.subr.mxu0 0.0
    %1143 = vmatpush1.msra.mxu0 0.0
    %1144 = vmatprep.subr.mxu0 0.0
    %1145 = vmatpush1.msra.mxu0 0.0
    %1146 = vmatprep.subr.mxu0 0.0
    %1147 = vmatpush1.msra.mxu0 0.0
    %1148 = vmatprep.subr.mxu0 0.0
    %1149 = vmatpush1.msra.mxu0 0.0
    %1150 = vmatprep.subr.mxu0 0.0
    %1151 = vmatpush1.msra.mxu0 0.0
    %1152 = vmatprep.subr.mxu0 0.0
    %1153 = vmatpush1.msra.mxu0 0.0
    %1154 = vmatprep.subr.mxu0 0.0
    %1155 = vmatpush1.msra.mxu0 0.0
    %1156 = vmatprep.subr.mxu0 0.0
    %1157 = vmatpush1.msra.mxu0 0.0
    %1158 = vmatprep.subr.mxu0 0.0
    %1159 = vmatpush1.msra.mxu0 0.0
    %1160 = vmatprep.subr.mxu0 0.0
    %1161 = vmatpush1.msra.mxu0 0.0
    %1162 = vmatprep.subr.mxu0 0.0
    %1163 = vmatpush1.msra.mxu0 0.0
    %1164 = vmatprep.subr.mxu0 0.0
    %1165 = vmatpush1.msra.mxu0 0.0
    %1166 = vmatprep.subr.mxu0 0.0
    %1167 = vmatpush1.msra.mxu0 0.0
    %1168 = vmatprep.subr.mxu0 0.0
    %1169 = vmatpush1.msra.mxu0 0.0
    %1170 = vmatprep.mubr.f32.mxu0 0.0
    %1171 = vmatmul.mubr.f32.gmra.mrb[0].mxu0 %v897
    %v1172 = vpop.f32.mrb[0].mxu0
    %v1173 = vadd.f32 %v296, %v1172
    %v1174 = vpop.f32.mrb[0].mxu0
    %1175 = vdwg.mxu0
    %1176 = vst [vmem:[#allocation14] sm:$0xff] %v1173
    // Predicated region
    $region62: #{tpu_custom_call.1} parent=1 // pred_check
      _
    $region63: #{tpu_custom_call.1} parent=1 // pred_check_branch
      %1178 = sbr.rel (0) target = $region65
    $region64: #{tpu_custom_call.1} parent=1 // pred_region
      %s1180 = ssub.s32 128, 128
      %1181 = vsyncadd [#allocation4], %s1180
      %s1183 = sshll.u32 [#allocation14], 4
      %s1184 = int_to_ptr.vmem [resolvable:$true] %s1183
      %1186 = dma.vmem_to_hbm [thread:$0]  %s1184, 128, %s9, [#allocation4]
    $region65: #{tpu_custom_call.1} parent=1 // pred_fallthru
      _
    // Predicated region
    $region66: #{tpu_custom_call.1} parent=1 // pred_check
      _
    $region67: #{tpu_custom_call.1} parent=1 // pred_check_branch
      %1188 = sbr.rel (0) target = $region69
    $region68: #{tpu_custom_call.1} parent=1 // pred_region
      %1189 = dma.done [#allocation4], 128
    $region69: #{tpu_custom_call.1} parent=1 // pred_fallthru
      _
    %1190 = vsyncpa [#allocation3], 1
    %1191 = vsyncpa [#allocation10], 1
    %1192 = vsyncpa [#allocation13], 1
    %1193 = vsyncpa [#allocation4], 1
    %1194 = vsyncpa [#allocation5], 1
    %1195 = vsyncpa [#allocation6], 1

</llo_original>
